<compile_context>
chip_gen: v5e
topology: v5e:2x2
jax: 0.10.0
libtpu: 0.0.40
codegen_flags: <defaults>
</compile_context>

<pallas_src>
import jax
import jax.numpy as jnp
import numpy as np
from jax.experimental import pallas as pl
from jax.experimental.pallas import tpu as pltpu


def _agg_kernel(nidx_ref,                         # scalar prefetch: (n_pad*K,) int32 in SMEM
                u2e_hbm,                          # (U, D) f32 table, memory_space=pl.ANY (HBM)
                uproj_ref, counts_ref,            # (TN,1,D) f32 / (TN,1) int32
                w1a_ref, w2_ref, b2_ref, w3t_ref, # bf16/bf16/f32/f32 weights (resident)
                out_ref,                          # (TN, D) f32
                eu_buf, dma_sem):                 # (TN*K, D) f32 VMEM scratch, DMA sem
    tnk, D = eu_buf.shape
    tn = uproj_ref.shape[0]
    K = tnk // tn
    base = pl.program_id(0) * tnk

    # ---- Fused gather: e_u = u2e[neigh_idx] as TN*K row DMAs (HBM -> VMEM).
    # Indices come from SMEM (scalar prefetch). All copies are issued before
    # any wait so they overlap each other in the DMA engine.
    @pl.loop(0, tnk)
    def _issue(r):
        idx = nidx_ref[base + r]
        pltpu.make_async_copy(u2e_hbm.at[pl.ds(idx, 1)],
                              eu_buf.at[pl.ds(r, 1)], dma_sem).start()

    @pl.loop(0, tnk)
    def _drain(r):
        # wait() only needs the semaphore + per-copy size; src index is static.
        pltpu.make_async_copy(u2e_hbm.at[pl.ds(0, 1)],
                              eu_buf.at[pl.ds(r, 1)], dma_sem).wait()
    # TODO(synk): cross-step double-buffering of the gather (2-slot scratch +
    # per-slot sems) needs a per-core-sequential grid axis; with "parallel"
    # semantics the prefetch chain would break across v7x's 2 cores.

    e_u = eu_buf[...]                                        # (TN*K, D) f32

    # att1: Linear(2D -> D) on concat(e_u, u_rep) split into two matmuls; the
    # u_rep half (+ b1) was hoisted to one dense matmul in the wrapper and
    # arrives as uproj (TN, 1, D).  MXU runs bf16 x bf16 -> f32 accumulation.
    h = jnp.dot(e_u.astype(jnp.bfloat16), w1a_ref[...],
                preferred_element_type=jnp.float32)          # (TN*K, D)
    h = h.reshape(tn, K, D) + uproj_ref[...]                 # broadcast over K
    h = jnp.maximum(h, 0.0)
    # TODO(synk): F.dropout is identity in eval mode; training-mode dropout not modeled.

    # att2: Linear(D -> D) + relu.
    h = jnp.dot(h.reshape(tnk, D).astype(jnp.bfloat16), w2_ref[...],
                preferred_element_type=jnp.float32)
    h = jnp.maximum(h + b2_ref[...], 0.0)                    # (TN*K, D) f32

    # att3: Linear(D -> 1) as VPU multiply + lane reduce (keeps the MXU free).
    # b3 is dropped: softmax is shift-invariant, so it cannot change the output.
    # Softmax is kept 2-D with K on lanes (review: drop the size-1 lane dim).
    logits = jnp.sum(h.reshape(tn, K, D) * w3t_ref[...], axis=-1)    # (TN, K)

    # Masked softmax over the neighbor axis (padding -> exactly-zero weight).
    k_ids = jax.lax.broadcasted_iota(jnp.int32, (tn, K), 1)
    logits = jnp.where(k_ids < counts_ref[...], logits, jnp.float32(-1e30))
    m = jnp.max(logits, axis=-1, keepdims=True)
    p = jnp.exp(logits - m)
    att = p * pl.reciprocal(jnp.sum(p, axis=-1, keepdims=True), approx=True)

    # att_history = (e_u.T @ att).T  ==  attention-weighted sum of neighbor rows.
    out_ref[...] = jnp.sum(att[:, :, None] * e_u.reshape(tn, K, D), axis=1)


def interacted_user_aggregation(u2e, nodes, neigh_idx, counts,
                                w1a, w1b, b1, w2, b2, w3, b3, *, tn=512):
    """u2e: (U, D) f32 table; nodes: (N,) int32; neigh_idx: (N, K) int32 (rows
    padded with any valid index); counts: (N,) int32 true neighbor counts.
    Weights use the x @ W convention (W1 split into w1a / w1b).  Returns (N, D).

    tn = nodes per grid step. Sweep 512-2048 at production N (bigger tiles ->
    better HBM efficiency); keep n_pad//tn >= 2 so both v7x TensorCores get
    work under dimension_semantics=("parallel",).
    """
    del b3  # softmax is shift-invariant; b3 has no effect on the output
    N, K = neigh_idx.shape
    U, D = u2e.shape

    # Guard (review): counts == 0 would softmax an all-masked row; clamp to 1.
    counts = jnp.maximum(counts.astype(jnp.int32), 1)

    # Hoisted center-node branch (exact): one dense matmul, b1 folded in.
    u_proj = (u2e[nodes] @ w1b + b1)[:, None, :].astype(jnp.float32)  # (N,1,D)

    # MXU operands in bf16 (f32 accumulation in-kernel); VPU math stays f32.
    # TODO(synk): storing u2e itself as bf16 would halve the dominant HBM
    # stream but needs packed-row (2xbf16->u32) DMA handling; kept f32 here.
    w1a_bf = w1a.astype(jnp.bfloat16)
    w2_bf = w2.astype(jnp.bfloat16)
    w3t = w3.reshape(1, D).astype(jnp.float32)

    # Pad the node axis to a multiple of tn (padded nodes: index 0, count 1).
    tn = max(8, ((min(int(tn), N) + 7) // 8) * 8)
    n_pad = pl.cdiv(N, tn) * tn
    pad = n_pad - N
    if pad:
        neigh_idx = jnp.pad(neigh_idx, ((0, pad), (0, 0)))
        counts = jnp.pad(counts, (0, pad), constant_values=1)
        u_proj = jnp.pad(u_proj, ((0, pad), (0, 0), (0, 0)))
    nidx_flat = neigh_idx.reshape(-1).astype(jnp.int32)  # 1-D: avoids 2-D SMEM padding
    counts2 = counts.reshape(n_pad, 1)

    grid_spec = pltpu.PrefetchScalarGridSpec(
        num_scalar_prefetch=1,
        grid=(n_pad // tn,),
        in_specs=[
            pl.BlockSpec(memory_space=pl.ANY),                   # u2e table (HBM)
            pl.BlockSpec((tn, 1, D), lambda i, nidx: (i, 0, 0)), # hoisted u_proj
            pl.BlockSpec((tn, 1), lambda i, nidx: (i, 0)),       # neighbor counts
            pl.BlockSpec((D, D), lambda i, nidx: (0, 0)),        # W1 (e_u half), bf16
            pl.BlockSpec((D, D), lambda i, nidx: (0, 0)),        # W2, bf16
            pl.BlockSpec((1, D), lambda i, nidx: (0, 0)),        # b2
            pl.BlockSpec((1, D), lambda i, nidx: (0, 0)),        # W3^T
        ],
        out_specs=pl.BlockSpec((tn, D), lambda i, nidx: (i, 0)),
        scratch_shapes=[
            pltpu.VMEM((tn * K, D), jnp.float32),                # gathered e_u slab
            pltpu.SemaphoreType.DMA(()),
        ],
    )

    out = pl.pallas_call(
        _agg_kernel,
        out_shape=jax.ShapeDtypeStruct((n_pad, D), jnp.float32),
        grid_spec=grid_spec,
        compiler_params=pltpu.CompilerParams(
            dimension_semantics=("parallel",)),
    )(nidx_flat, u2e, u_proj, counts2, w1a_bf, w2_bf, b2, w3t)
    return out[:N]


def reference_forward(u2e, nodes, neigh_lists, w1a, w1b, b1, w2, b2, w3, b3):
    """Pure-JAX replica of the PyTorch per-node loop (variable lengths, f32)."""
    outs = []
    for i in range(len(nodes)):
        idx = jnp.asarray(neigh_lists[i], dtype=jnp.int32)
        e_u = u2e[idx]                                  # (k, D)
        u_rep = u2e[nodes[i]][None, :]                  # (1, D)
        h = jax.nn.relu(e_u @ w1a + u_rep @ w1b + b1)
        h = jax.nn.relu(h @ w2 + b2)
        logits = h @ w3 + b3                            # (k, 1)
        att = jax.nn.softmax(logits, axis=0)
        outs.append((e_u.T @ att).T[0])
    return jnp.stack(outs)


if __name__ == "__main__":
    N = 64         # number of nodes in the batch
    K = 8          # max neighbors (pad length); TN*K = 256 MXU-friendly rows
    D = 32         # embed_dim
    NUM_USERS = 128
    TN = 32        # nodes per grid step (demo size; keeps grid >= 2 for v7x)

    key = jax.random.PRNGKey(0)
    (k_emb, k_cnt, k_nbr, k_nod, k_w1, k_b1, k_w2, k_b2, k_w3, k_b3) = \
        jax.random.split(key, 10)

    # Parameters (deterministic synthetic init).
    u2e = jax.random.normal(k_emb, (NUM_USERS, D), jnp.float32) * 0.5
    w1 = jax.random.normal(k_w1, (2 * D, D), jnp.float32) * 0.1   # Linear(2D, D)^T
    w1a, w1b = w1[:D], w1[D:]
    b1 = jax.random.normal(k_b1, (1, D), jnp.float32) * 0.1
    w2 = jax.random.normal(k_w2, (D, D), jnp.float32) * 0.1       # Linear(D, D)^T
    b2 = jax.random.normal(k_b2, (1, D), jnp.float32) * 0.1
    w3 = jax.random.normal(k_w3, (D, 1), jnp.float32) * 0.1       # Linear(D, 1)^T
    b3 = jax.random.normal(k_b3, (1, 1), jnp.float32) * 0.1

    # Synthetic graph inputs: nodes + variable-length neighbor lists.
    counts = np.asarray(jax.random.randint(k_cnt, (N,), 3, K + 1))
    neigh_idx = np.asarray(jax.random.randint(k_nbr, (N, K), 0, NUM_USERS))
    nodes = np.asarray(jax.random.randint(k_nod, (N,), 0, NUM_USERS))
    neigh_lists = [list(neigh_idx[i, : counts[i]]) for i in range(N)]

    out = interacted_user_aggregation(
        u2e, jnp.asarray(nodes, jnp.int32), jnp.asarray(neigh_idx, jnp.int32),
        jnp.asarray(counts, jnp.int32), w1a, w1b, b1, w2, b2, w3, b3, tn=TN)
    out = jax.block_until_ready(out)

    ref = reference_forward(u2e, nodes, neigh_lists,
                            w1a, w1b, b1, w2, b2, w3, b3)
    # bf16 MXU operands (f32 accumulation) -> loosen tolerance vs the f32
    # reference; wrong results would be O(0.5) off, so this still catches bugs.
    np.testing.assert_allclose(np.asarray(out), np.asarray(ref),
                               rtol=2e-2, atol=2e-2)
    print("KERNEL_OK")
</pallas_src>

<mosaic_0001>
module attributes {stable_mosaic.version = 11 : i64} {
  func.func @_agg_kernel(%arg0: i32, %arg1: memref<512xi32, #tpu.memory_space<smem>>, %arg2: memref<128x32xf32, #tpu.memory_space<any>>, %arg3: memref<32x1x32xf32, #tpu.memory_space<vmem>>, %arg4: memref<32x1xi32, #tpu.memory_space<vmem>>, %arg5: memref<32x32xbf16, #tpu.memory_space<vmem>>, %arg6: memref<32x32xbf16, #tpu.memory_space<vmem>>, %arg7: memref<1x32xf32, #tpu.memory_space<vmem>>, %arg8: memref<1x32xf32, #tpu.memory_space<vmem>>, %arg9: memref<32x32xf32, #tpu.memory_space<vmem>>, %arg10: memref<256x32xf32, #tpu.memory_space<vmem>>, %arg11: memref<!tpu.dma_semaphore, #tpu.memory_space<semaphore_mem>>) attributes {dimension_semantics = [#tpu.dimension_semantics<parallel>], iteration_bounds = array<i64: 2>, scalar_prefetch = 1 : i64, scratch_operands = 2 : i64, tpu.core_type = #tpu.core_type<tc>, window_params = [{}, {transform_indices = @transform_1, window_bounds = array<i64: 32, 1, 32>}, {transform_indices = @transform_2, window_bounds = array<i64: 32, 1>}, {pipeline_mode = #tpu.pipeline_mode<synchronous>, transform_indices = @transform_3, window_bounds = array<i64: 32, 32>}, {pipeline_mode = #tpu.pipeline_mode<synchronous>, transform_indices = @transform_4, window_bounds = array<i64: 32, 32>}, {pipeline_mode = #tpu.pipeline_mode<synchronous>, transform_indices = @transform_5, window_bounds = array<i64: 1, 32>}, {pipeline_mode = #tpu.pipeline_mode<synchronous>, transform_indices = @transform_6, window_bounds = array<i64: 1, 32>}, {transform_indices = @transform_7, window_bounds = array<i64: 32, 32>}]} {
    %c256_i32 = arith.constant 256 : i32
    %0 = arith.muli %arg0, %c256_i32 : i32
    %c0_i32 = arith.constant 0 : i32
    %c256_i32_0 = arith.constant 256 : i32
    %1 = arith.addi %c0_i32, %c256_i32_0 : i32
    %c1_i32 = arith.constant 1 : i32
    scf.for %arg12 = %c0_i32 to %1 step %c1_i32  : i32 {
      %c1_i32_30 = arith.constant 1 : i32
      %50 = arith.muli %arg12, %c1_i32_30 : i32
      %c0_i32_31 = arith.constant 0 : i32
      %51 = arith.addi %c0_i32_31, %50 : i32
      %52 = arith.addi %0, %51 : i32
      %53 = arith.index_cast %52 : i32 to index
      %54 = memref.load %arg1[%53] : memref<512xi32, #tpu.memory_space<smem>>
      %c0_i32_32 = arith.constant 0 : i32
      %55 = tpu.memref_slice %arg2[%54, %c0_i32_32] : memref<128x32xf32, #tpu.memory_space<any>> -> memref<1x32xf32, #tpu.memory_space<any>>
      %c0_i32_33 = arith.constant 0 : i32
      %56 = tpu.memref_slice %arg10[%51, %c0_i32_33] : memref<256x32xf32, #tpu.memory_space<vmem>> -> memref<1x32xf32, #tpu.memory_space<vmem>>
      tpu.enqueue_dma source(%55 : memref<1x32xf32, #tpu.memory_space<any>>) target(%56 : memref<1x32xf32, #tpu.memory_space<vmem>>) target_semaphore(%arg11 : memref<!tpu.dma_semaphore, #tpu.memory_space<semaphore_mem>>)
    }
    %c256_i32_1 = arith.constant 256 : i32
    %c0_i32_2 = arith.constant 0 : i32
    %c256_i32_3 = arith.constant 256 : i32
    %2 = arith.addi %c0_i32_2, %c256_i32_3 : i32
    %c1_i32_4 = arith.constant 1 : i32
    scf.for %arg12 = %c0_i32_2 to %2 step %c1_i32_4  : i32 {
      %c1_i32_30 = arith.constant 1 : i32
      %50 = arith.muli %arg12, %c1_i32_30 : i32
      %c0_i32_31 = arith.constant 0 : i32
      %51 = arith.addi %c0_i32_31, %50 : i32
      %c0_i32_32 = arith.constant 0 : i32
      %c0_i32_33 = arith.constant 0 : i32
      %52 = tpu.memref_slice %arg2[%c0_i32_32, %c0_i32_33] : memref<128x32xf32, #tpu.memory_space<any>> -> memref<1x32xf32, #tpu.memory_space<any>>
      %c0_i32_34 = arith.constant 0 : i32
      %53 = tpu.memref_slice %arg10[%51, %c0_i32_34] : memref<256x32xf32, #tpu.memory_space<vmem>> -> memref<1x32xf32, #tpu.memory_space<vmem>>
      tpu.wait_dma2 semaphore(%arg11 : memref<!tpu.dma_semaphore, #tpu.memory_space<semaphore_mem>>) src(%52 : memref<1x32xf32, #tpu.memory_space<any>>) dst(%53 : memref<1x32xf32, #tpu.memory_space<vmem>>)
    }
    %c256_i32_5 = arith.constant 256 : i32
    %c0 = arith.constant 0 : index
    %c0_6 = arith.constant 0 : index
    %3 = vector.load %arg10[%c0, %c0_6] : memref<256x32xf32, #tpu.memory_space<vmem>>, vector<256x32xf32>
    %4 = arith.truncf %3 : vector<256x32xf32> to vector<256x32xbf16>
    %c0_7 = arith.constant 0 : index
    %c0_8 = arith.constant 0 : index
    %5 = vector.load %arg5[%c0_7, %c0_8] : memref<32x32xbf16, #tpu.memory_space<vmem>>, vector<32x32xbf16>
    %cst = arith.constant dense<0.000000e+00> : vector<256x32xf32>
    %6 = tpu.matmul %4, %5, %cst {dimension_numbers = #tpu.dot_dimension_numbers<[1], [0], [0], [1], [0, 0, 1, 1], [], []>} : vector<256x32xbf16>, vector<32x32xbf16>, vector<256x32xf32> -> vector<256x32xf32>
    %7 = vector.shape_cast %6 : vector<256x32xf32> to vector<32x8x32xf32>
    %c0_9 = arith.constant 0 : index
    %c0_10 = arith.constant 0 : index
    %c0_11 = arith.constant 0 : index
    %8 = vector.load %arg3[%c0_9, %c0_10, %c0_11] : memref<32x1x32xf32, #tpu.memory_space<vmem>>, vector<32x1x32xf32>
    %9 = vector.broadcast %8 : vector<32x1x32xf32> to vector<32x8x32xf32>
    %10 = arith.addf %7, %9 : vector<32x8x32xf32>
    %cst_12 = arith.constant 0.000000e+00 : f32
    %11 = vector.broadcast %cst_12 : f32 to vector<32x8x32xf32>
    %12 = arith.maximumf %10, %11 : vector<32x8x32xf32>
    %13 = vector.shape_cast %12 : vector<32x8x32xf32> to vector<256x32xf32>
    %14 = arith.truncf %13 : vector<256x32xf32> to vector<256x32xbf16>
    %c0_13 = arith.constant 0 : index
    %c0_14 = arith.constant 0 : index
    %15 = vector.load %arg6[%c0_13, %c0_14] : memref<32x32xbf16, #tpu.memory_space<vmem>>, vector<32x32xbf16>
    %cst_15 = arith.constant dense<0.000000e+00> : vector<256x32xf32>
    %16 = tpu.matmul %14, %15, %cst_15 {dimension_numbers = #tpu.dot_dimension_numbers<[1], [0], [0], [1], [0, 0, 1, 1], [], []>} : vector<256x32xbf16>, vector<32x32xbf16>, vector<256x32xf32> -> vector<256x32xf32>
    %c0_16 = arith.constant 0 : index
    %c0_17 = arith.constant 0 : index
    %17 = vector.load %arg7[%c0_16, %c0_17] : memref<1x32xf32, #tpu.memory_space<vmem>>, vector<1x32xf32>
    %18 = vector.broadcast %17 : vector<1x32xf32> to vector<256x32xf32>
    %19 = arith.addf %16, %18 : vector<256x32xf32>
    %cst_18 = arith.constant 0.000000e+00 : f32
    %20 = vector.broadcast %cst_18 : f32 to vector<256x32xf32>
    %21 = arith.maximumf %19, %20 : vector<256x32xf32>
    %22 = vector.shape_cast %21 : vector<256x32xf32> to vector<32x8x32xf32>
    %c0_19 = arith.constant 0 : index
    %c0_20 = arith.constant 0 : index
    %23 = vector.load %arg8[%c0_19, %c0_20] : memref<1x32xf32, #tpu.memory_space<vmem>>, vector<1x32xf32>
    %24 = vector.shape_cast %23 : vector<1x32xf32> to vector<1x1x32xf32>
    %25 = vector.broadcast %24 : vector<1x1x32xf32> to vector<32x8x32xf32>
    %26 = arith.mulf %22, %25 : vector<32x8x32xf32>
    %cst_21 = arith.constant dense<0.000000e+00> : vector<32x8xf32>
    %27 = vector.multi_reduction <add>, %26, %cst_21 [2] : vector<32x8x32xf32> to vector<32x8xf32>
    %28 = tpu.iota {dimensions = array<i32: 1>} : vector<32x8xi32>
    %c0_22 = arith.constant 0 : index
    %c0_23 = arith.constant 0 : index
    %29 = vector.load %arg4[%c0_22, %c0_23] : memref<32x1xi32, #tpu.memory_space<vmem>>, vector<32x1xi32>
    %30 = vector.broadcast %29 : vector<32x1xi32> to vector<32x8xi32>
    %31 = arith.cmpi slt, %28, %30 : vector<32x8xi32>
    %cst_24 = arith.constant -1.000000e+30 : f32
    %32 = vector.broadcast %cst_24 : f32 to vector<32x8xf32>
    %33 = arith.select %31, %27, %32 : vector<32x8xi1>, vector<32x8xf32>
    %cst_25 = arith.constant dense<0xFF800000> : vector<32xf32>
    %34 = vector.multi_reduction <maximumf>, %33, %cst_25 [1] : vector<32x8xf32> to vector<32xf32>
    %35 = vector.shape_cast %34 : vector<32xf32> to vector<32x1xf32>
    %36 = vector.broadcast %35 : vector<32x1xf32> to vector<32x8xf32>
    %37 = arith.subf %33, %36 : vector<32x8xf32>
    %38 = math.exp %37 : vector<32x8xf32>
    %cst_26 = arith.constant dense<0.000000e+00> : vector<32xf32>
    %39 = vector.multi_reduction <add>, %38, %cst_26 [1] : vector<32x8xf32> to vector<32xf32>
    %40 = vector.shape_cast %39 : vector<32xf32> to vector<32x1xf32>
    %41 = tpu.reciprocal %40 {approx = true} : vector<32x1xf32> -> vector<32x1xf32>
    %42 = vector.broadcast %41 : vector<32x1xf32> to vector<32x8xf32>
    %43 = arith.mulf %38, %42 : vector<32x8xf32>
    %44 = vector.shape_cast %43 : vector<32x8xf32> to vector<32x8x1xf32>
    %45 = vector.shape_cast %3 : vector<256x32xf32> to vector<32x8x32xf32>
    %46 = vector.broadcast %44 : vector<32x8x1xf32> to vector<32x8x32xf32>
    %47 = arith.mulf %46, %45 : vector<32x8x32xf32>
    %cst_27 = arith.constant dense<0.000000e+00> : vector<32x32xf32>
    %48 = vector.multi_reduction <add>, %47, %cst_27 [1] : vector<32x8x32xf32> to vector<32x32xf32>
    %c0_28 = arith.constant 0 : index
    %c0_29 = arith.constant 0 : index
    %49 = vector.load %arg9[%c0_28, %c0_29] : memref<32x32xf32, #tpu.memory_space<vmem>>, vector<32x32xf32>
    tpu.vector_store %arg9[%c0_28, %c0_29], %48 {strides = array<i32>} : memref<32x32xf32, #tpu.memory_space<vmem>>, vector<32x32xf32>,
    return
  }
  func.func @transform_1(%arg0: i32, %arg1: memref<512xi32, #tpu.memory_space<smem>>) -> (i32, i32, i32) {
    %c0_i32 = arith.constant 0 : i32
    %c0_i32_0 = arith.constant 0 : i32
    %c0_i32_1 = arith.constant 0 : i32
    return %arg0, %c0_i32, %c0_i32_0 : i32, i32, i32
  }
  func.func @transform_2(%arg0: i32, %arg1: memref<512xi32, #tpu.memory_space<smem>>) -> (i32, i32) {
    %c0_i32 = arith.constant 0 : i32
    %c0_i32_0 = arith.constant 0 : i32
    return %arg0, %c0_i32 : i32, i32
  }
  func.func @transform_3(%arg0: i32, %arg1: memref<512xi32, #tpu.memory_space<smem>>) -> (i32, i32) {
    %c0_i32 = arith.constant 0 : i32
    %c0_i32_0 = arith.constant 0 : i32
    %c0_i32_1 = arith.constant 0 : i32
    return %c0_i32, %c0_i32_0 : i32, i32
  }
  func.func @transform_4(%arg0: i32, %arg1: memref<512xi32, #tpu.memory_space<smem>>) -> (i32, i32) {
    %c0_i32 = arith.constant 0 : i32
    %c0_i32_0 = arith.constant 0 : i32
    %c0_i32_1 = arith.constant 0 : i32
    return %c0_i32, %c0_i32_0 : i32, i32
  }
  func.func @transform_5(%arg0: i32, %arg1: memref<512xi32, #tpu.memory_space<smem>>) -> (i32, i32) {
    %c0_i32 = arith.constant 0 : i32
    %c0_i32_0 = arith.constant 0 : i32
    %c0_i32_1 = arith.constant 0 : i32
    return %c0_i32, %c0_i32_0 : i32, i32
  }
  func.func @transform_6(%arg0: i32, %arg1: memref<512xi32, #tpu.memory_space<smem>>) -> (i32, i32) {
    %c0_i32 = arith.constant 0 : i32
    %c0_i32_0 = arith.constant 0 : i32
    %c0_i32_1 = arith.constant 0 : i32
    return %c0_i32, %c0_i32_0 : i32, i32
  }
  func.func @transform_7(%arg0: i32, %arg1: memref<512xi32, #tpu.memory_space<smem>>) -> (i32, i32) {
    %c0_i32 = arith.constant 0 : i32
    %c0_i32_0 = arith.constant 0 : i32
    return %arg0, %c0_i32 : i32, i32
  }
}

</mosaic_0001>

<llo_original>
// kernel: tpu_custom_call.1
$region0: #{tpu_custom_call.1}
  #allocation0 [shape = 'u32[]', space=smem, size = 0x4, offset = 0x4, fixed_abs, tag = 'smem constant byte address 0x4 - core index']
  #allocation1 [shape = 'u32[72,128]{1,0:T(1,128)}', space=vmem, size = 0x9000, scoped, tag = 'internal scratch']
  #allocation2 [shape = 'f32[256,32]{1,0:T(8,128)}', space=vmem, size = 0x20000, scoped, tag = 'scratch operand']
  #allocation3 [shape = 's32[1]{0}', space=sflag, size = 0x4, scoped, tag = 'scratch operand']
  #allocation4 [shape = 's32[1]{0}', space=sflag, size = 0x4, scoped, tag = 'scoped memory for tpu_custom_call.1']
  #allocation5 [shape = 'u8[2048]{0}', space=smem, size = 0x800, scoped, tag = 'prefetched SMEM operand 0']
  #allocation6 [shape = 's32[]', space=sflag, size = 0x4, offset = 0, fixed_abs, tag = 'sflag constant byte address 0x0 - dummy sync flag']
  %s0 = inlined_call_operand.vmem [shape: s32[512], index: 0, kind: input, shape index: {}]
  %s1 = inlined_call_operand.vmem [shape: f32[128,32], index: 1, kind: input, shape index: {}]
  %s2 = inlined_call_operand.vmem [shape: f32[64,1,32], index: 2, kind: input, shape index: {}]
  %s3 = inlined_call_operand.vmem [shape: s32[64,1], index: 3, kind: input, shape index: {}]
  %s4 = inlined_call_operand.vmem [shape: bf16[32,32], index: 4, kind: input, shape index: {}]
  %s5 = inlined_call_operand.vmem [shape: bf16[32,32], index: 5, kind: input, shape index: {}]
  %s6 = inlined_call_operand.vmem [shape: f32[1,32], index: 6, kind: input, shape index: {}]
  %s7 = inlined_call_operand.vmem [shape: f32[1,32], index: 7, kind: input, shape index: {}]
  %s8 = inlined_call_operand.vmem [shape: f32[64,32], index: 8, kind: output, shape index: {}]
  %s9 = sld [smem:[#allocation0]]
  $region101: #{tpu_custom_call.1} parent=0
    _
  %s11 = ssub.s32 1, %s9
  %s12 = scalar_select 0, %s11, %s9
  %s14 = sshll.u32 %s0, 4
  %s15 = int_to_ptr.vmem [resolvable:$true] %s14
  %17 = dma.vmem_to_smem %s15, 64, [#allocation5], [#allocation4]
  %19 = dma.done [#allocation4], 64
  %20 = sfence
  loop: start=0, step=1, limit=4
  $region2: #{tpu_custom_call.1} parent=0 // loop_pre_header
    _
  $region3: #{tpu_custom_call.1} parent=0 // loop_header
    %s22 = sphi 0, %s26
    %p23 = scmp.ge.s32.totalorder %s22, 4
    %s32 = sphi 0, %s34
    %s35 = sphi 0, %s32
    %s36 = sphi 0, %s35
    %s52 = sphi 0, %s36
    %s58 = sphi 0, %s60
    %s61 = sphi 0, %s58
    %s62 = sphi 0, %s61
    %s78 = sphi 0, %s62
    %s82 = sphi 0, %s82
    %s84 = sphi 0, %s82
    %s85 = sphi 0, %s84
    %s99 = sphi 0, %s85
    %s103 = sphi 0, %s103
    %s105 = sphi 0, %s103
    %s106 = sphi 0, %s105
    %s120 = sphi 0, %s106
    %s124 = sphi 0, %s124
    %s126 = sphi 0, %s124
    %s127 = sphi 0, %s126
    %s141 = sphi 0, %s127
    %s145 = sphi 0, %s145
    %s147 = sphi 0, %s145
    %s148 = sphi 0, %s147
    %s162 = sphi 0, %s148
    %s168 = sphi 0, %s170
    %s171 = sphi 0, %s168
    %s172 = sphi 0, %s171
    %s188 = sphi 0, %s172
  $region4: #{tpu_custom_call.1} parent=0 // loop_header_branch
    %25 = sbr.rel (%p23) target = $region8
  $region5: #{tpu_custom_call.1} parent=0 // loop_body
    %s27 = ssub.s32 %s22, 1
    %s28 = ssub.s32 %s22, 2
    %s29 = sadd.s32 %s22, 1
    %s30 = ssub.s32 %s22, %s29
    %p31 = scmp.eq.s32.totalorder %s30, 0
    %s33 = sadd.s32 %s32, 1
    %s34 = scalar_select %p31, %s32, %s33
    %p37 = pneg %p31
    %p38 = scmp.eq.s32.totalorder %s22, 1
    %p39 = por %p37, %p38
    %p40 = scmp.ne.s32.totalorder %s32, %s35
    %p41 = scmp.eq.s32.totalorder %s22, 0
    %p42 = por %p40, %p41
    %p43 = scmp.ne.s32.totalorder %s32, %s35
    %p44 = scmp.eq.s32.totalorder %s27, 1
    %p45 = por %p43, %p44
    %p46 = scmp.ne.s32.totalorder %s35, %s36
    %p47 = scmp.eq.s32.totalorder %s27, 0
    %p48 = por %p46, %p47
    %p49 = scmp.ne.s32.totalorder %s35, %s36
    %p50 = scmp.eq.s32.totalorder %s28, 1
    %p51 = por %p49, %p50
    %p53 = scmp.ne.s32.totalorder %s36, %s52
    %p54 = scmp.eq.s32.totalorder %s28, 0
    %p55 = por %p53, %p54
    %s56 = ssub.s32 %s22, %s29
    %p57 = scmp.eq.s32.totalorder %s56, 0
    %s59 = sadd.s32 %s58, 1
    %s60 = scalar_select %p57, %s58, %s59
    %p63 = pneg %p57
    %p64 = scmp.eq.s32.totalorder %s22, 1
    %p65 = por %p63, %p64
    %p66 = scmp.ne.s32.totalorder %s58, %s61
    %p67 = scmp.eq.s32.totalorder %s22, 0
    %p68 = por %p66, %p67
    %p69 = scmp.ne.s32.totalorder %s58, %s61
    %p70 = scmp.eq.s32.totalorder %s27, 1
    %p71 = por %p69, %p70
    %p72 = scmp.ne.s32.totalorder %s61, %s62
    %p73 = scmp.eq.s32.totalorder %s27, 0
    %p74 = por %p72, %p73
    %p75 = scmp.ne.s32.totalorder %s61, %s62
    %p76 = scmp.eq.s32.totalorder %s28, 1
    %p77 = por %p75, %p76
    %p79 = scmp.ne.s32.totalorder %s62, %s78
    %p80 = scmp.eq.s32.totalorder %s28, 0
    %p81 = por %p79, %p80
    %s83 = sadd.s32 %s82, 1
    %p86 = scmp.eq.s32.totalorder %s22, 1
    %p87 = scmp.ne.s32.totalorder %s82, %s84
    %p88 = scmp.eq.s32.totalorder %s22, 0
    %p89 = por %p87, %p88
    %p90 = scmp.ne.s32.totalorder %s82, %s84
    %p91 = scmp.eq.s32.totalorder %s27, 1
    %p92 = por %p90, %p91
    %p93 = scmp.ne.s32.totalorder %s84, %s85
    %p94 = scmp.eq.s32.totalorder %s27, 0
    %p95 = por %p93, %p94
    %p96 = scmp.ne.s32.totalorder %s84, %s85
    %p97 = scmp.eq.s32.totalorder %s28, 1
    %p98 = por %p96, %p97
    %p100 = scmp.ne.s32.totalorder %s85, %s99
    %p101 = scmp.eq.s32.totalorder %s28, 0
    %p102 = por %p100, %p101
    %s104 = sadd.s32 %s103, 1
    %p107 = scmp.eq.s32.totalorder %s22, 1
    %p108 = scmp.ne.s32.totalorder %s103, %s105
    %p109 = scmp.eq.s32.totalorder %s22, 0
    %p110 = por %p108, %p109
    %p111 = scmp.ne.s32.totalorder %s103, %s105
    %p112 = scmp.eq.s32.totalorder %s27, 1
    %p113 = por %p111, %p112
    %p114 = scmp.ne.s32.totalorder %s105, %s106
    %p115 = scmp.eq.s32.totalorder %s27, 0
    %p116 = por %p114, %p115
    %p117 = scmp.ne.s32.totalorder %s105, %s106
    %p118 = scmp.eq.s32.totalorder %s28, 1
    %p119 = por %p117, %p118
    %p121 = scmp.ne.s32.totalorder %s106, %s120
    %p122 = scmp.eq.s32.totalorder %s28, 0
    %p123 = por %p121, %p122
    %s125 = sadd.s32 %s124, 1
    %p128 = scmp.eq.s32.totalorder %s22, 1
    %p129 = scmp.ne.s32.totalorder %s124, %s126
    %p130 = scmp.eq.s32.totalorder %s22, 0
    %p131 = por %p129, %p130
    %p132 = scmp.ne.s32.totalorder %s124, %s126
    %p133 = scmp.eq.s32.totalorder %s27, 1
    %p134 = por %p132, %p133
    %p135 = scmp.ne.s32.totalorder %s126, %s127
    %p136 = scmp.eq.s32.totalorder %s27, 0
    %p137 = por %p135, %p136
    %p138 = scmp.ne.s32.totalorder %s126, %s127
    %p139 = scmp.eq.s32.totalorder %s28, 1
    %p140 = por %p138, %p139
    %p142 = scmp.ne.s32.totalorder %s127, %s141
    %p143 = scmp.eq.s32.totalorder %s28, 0
    %p144 = por %p142, %p143
    %s146 = sadd.s32 %s145, 1
    %p149 = scmp.eq.s32.totalorder %s22, 1
    %p150 = scmp.ne.s32.totalorder %s145, %s147
    %p151 = scmp.eq.s32.totalorder %s22, 0
    %p152 = por %p150, %p151
    %p153 = scmp.ne.s32.totalorder %s145, %s147
    %p154 = scmp.eq.s32.totalorder %s27, 1
    %p155 = por %p153, %p154
    %p156 = scmp.ne.s32.totalorder %s147, %s148
    %p157 = scmp.eq.s32.totalorder %s27, 0
    %p158 = por %p156, %p157
    %p159 = scmp.ne.s32.totalorder %s147, %s148
    %p160 = scmp.eq.s32.totalorder %s28, 1
    %p161 = por %p159, %p160
    %p163 = scmp.ne.s32.totalorder %s148, %s162
    %p164 = scmp.eq.s32.totalorder %s28, 0
    %p165 = por %p163, %p164
    %s166 = ssub.s32 %s22, %s29
    %p167 = scmp.eq.s32.totalorder %s166, 0
    %s169 = sadd.s32 %s168, 1
    %s170 = scalar_select %p167, %s168, %s169
    %p173 = pneg %p167
    %p174 = scmp.eq.s32.totalorder %s22, 1
    %p175 = por %p173, %p174
    %p176 = scmp.ne.s32.totalorder %s168, %s171
    %p177 = scmp.eq.s32.totalorder %s22, 0
    %p178 = por %p176, %p177
    %p179 = scmp.ne.s32.totalorder %s168, %s171
    %p180 = scmp.eq.s32.totalorder %s27, 1
    %p181 = por %p179, %p180
    %p182 = scmp.ne.s32.totalorder %s171, %s172
    %p183 = scmp.eq.s32.totalorder %s27, 0
    %p184 = por %p182, %p183
    %p185 = scmp.ne.s32.totalorder %s171, %s172
    %p186 = scmp.eq.s32.totalorder %s28, 1
    %p187 = por %p185, %p186
    %p189 = scmp.ne.s32.totalorder %s172, %s188
    %p190 = scmp.eq.s32.totalorder %s28, 0
    %p191 = por %p189, %p190
    %p192 = scmp.le.s32.totalorder 1, %s22
    %p193 = scmp.lt.s32.totalorder %s22, 3
    %p194 = pnand %p192, %p193
    %p195 = pneg %p194
    // Predicated region
    $region9: #{tpu_custom_call.1} parent=5 // pred_check
      _
    $region10: #{tpu_custom_call.1} parent=5 // pred_check_branch
      %197 = sbr.rel (%p194) target = $region12
    $region11: #{tpu_custom_call.1} parent=5 // pred_region
      %s198 = ssub.s32 %s22, 1
      // Predicated region
      $region13: #{tpu_custom_call.1} parent=11 // pred_check
        %p199 = pneg %p95
      $region14: #{tpu_custom_call.1} parent=11 // pred_check_branch
        %201 = sbr.rel (%p199) target = $region16
      $region15: #{tpu_custom_call.1} parent=11 // pred_region
        _
      $region16: #{tpu_custom_call.1} parent=11 // pred_fallthru
        _
      // Predicated region
      $region17: #{tpu_custom_call.1} parent=11 // pred_check
        %p202 = pneg %p116
      $region18: #{tpu_custom_call.1} parent=11 // pred_check_branch
        %204 = sbr.rel (%p202) target = $region20
      $region19: #{tpu_custom_call.1} parent=11 // pred_region
        _
      $region20: #{tpu_custom_call.1} parent=11 // pred_fallthru
        _
      // Predicated region
      $region21: #{tpu_custom_call.1} parent=11 // pred_check
        %p205 = pneg %p137
      $region22: #{tpu_custom_call.1} parent=11 // pred_check_branch
        %207 = sbr.rel (%p205) target = $region24
      $region23: #{tpu_custom_call.1} parent=11 // pred_region
        _
      $region24: #{tpu_custom_call.1} parent=11 // pred_fallthru
        _
      // Predicated region
      $region25: #{tpu_custom_call.1} parent=11 // pred_check
        %p208 = pneg %p158
      $region26: #{tpu_custom_call.1} parent=11 // pred_check_branch
        %210 = sbr.rel (%p208) target = $region28
      $region27: #{tpu_custom_call.1} parent=11 // pred_region
        _
      $region28: #{tpu_custom_call.1} parent=11 // pred_fallthru
        _
    $region12: #{tpu_custom_call.1} parent=5 // pred_fallthru
      _
    %p211 = scmp.lt.s32.totalorder %s22, 2
    // Predicated region
    $region29: #{tpu_custom_call.1} parent=5 // pred_check
      %p212 = pneg %p211
    $region30: #{tpu_custom_call.1} parent=5 // pred_check_branch
      %214 = sbr.rel (%p212) target = $region32
    $region31: #{tpu_custom_call.1} parent=5 // pred_region
      // Predicated region
      $region33: #{tpu_custom_call.1} parent=31 // pred_check
        %p215 = pneg %p42
      $region34: #{tpu_custom_call.1} parent=31 // pred_check_branch
        %217 = sbr.rel (%p215) target = $region36
      $region35: #{tpu_custom_call.1} parent=31 // pred_region
        %s218 = smul.u32 32, %s22
        %p219 = scmp.lt.s32.totalorder %s218, 63
        %s220 = scalar_select %p219, %s218, 63
        %s221 = scalar_lea.vmem %s2, %s220
        %s222 = smul.u32 32, %s22
      $region36: #{tpu_custom_call.1} parent=31 // pred_fallthru
        _
      // Predicated region
      $region37: #{tpu_custom_call.1} parent=31 // pred_check
        %p223 = pneg %p68
      $region38: #{tpu_custom_call.1} parent=31 // pred_check_branch
        %225 = sbr.rel (%p223) target = $region40
      $region39: #{tpu_custom_call.1} parent=31 // pred_region
        %s226 = smul.u32 4, %s22
        %p227 = scmp.lt.s32.totalorder %s226, 7
        %s228 = scalar_select %p227, %s226, 7
        %s229 = smul.addr %s228, 8
        %s230 = scalar_lea.vmem %s3, %s229
        %s231 = smul.u32 4, %s22
      $region40: #{tpu_custom_call.1} parent=31 // pred_fallthru
        _
    $region32: #{tpu_custom_call.1} parent=5 // pred_fallthru
      _
    %p232 = scmp.le.s32.totalorder 1, %s22
    %p233 = scmp.lt.s32.totalorder %s22, 3
    %p234 = pnand %p232, %p233
    %p235 = pneg %p234
    // Predicated region
    $region41: #{tpu_custom_call.1} parent=5 // pred_check
      _
    $region42: #{tpu_custom_call.1} parent=5 // pred_check_branch
      %237 = sbr.rel (%p234) target = $region44
    $region43: #{tpu_custom_call.1} parent=5 // pred_region
      %s238 = ssub.s32 %s22, 1
      %s239 = smul.u32 32, %s27
      %p240 = scmp.lt.s32.totalorder %s239, 63
      %s241 = scalar_select %p240, %s239, 63
      %s242 = scalar_lea.vmem %s2, %s241
      %p243 = pneg %p48
      %p244 = pneg %p45
      %s245 = smul.u32 4, %s27
      %p246 = scmp.lt.s32.totalorder %s245, 7
      %s247 = scalar_select %p246, %s245, 7
      %s248 = smul.addr %s247, 8
      %s249 = scalar_lea.vmem %s3, %s248
      %p250 = pneg %p74
      %p251 = pneg %p71
      %p252 = pneg %p95
      %p253 = pneg %p92
      %p254 = pneg %p116
      %p255 = pneg %p113
      %p256 = pneg %p137
      %p257 = pneg %p134
      %p258 = pneg %p158
      %p259 = pneg %p155
      %p260 = pneg %p184
      %p261 = pneg %p181
      %s262 = smul.u32 4, %s27
      %p263 = scmp.lt.s32.totalorder %s262, 7
      %s264 = scalar_select %p263, %s262, 7
      %s265 = smul.addr %s264, 8
      %s266 = scalar_lea.vmem %s8, %s265
      %s267 = smul.u32 32, %s27
      %p268 = scmp.lt.s32.totalorder %s267, 63
      %s269 = scalar_select %p268, %s267, 63
      %s270 = scalar_lea.vmem %s2, %s269
      %s271 = smul.u32 32, %s27
      %s272 = smul.u32 4, %s27
      %p273 = scmp.lt.s32.totalorder %s272, 7
      %s274 = scalar_select %p273, %s272, 7
      %s275 = smul.addr %s274, 8
      %s276 = scalar_lea.vmem %s3, %s275
      %s277 = smul.u32 4, %s27
      %s278 = smul.u32 4, %s27
      %p279 = scmp.lt.s32.totalorder %s278, 7
      %s280 = scalar_select %p279, %s278, 7
      %s281 = smul.addr %s280, 8
      %s282 = scalar_lea.vmem %s8, %s281
      %s283 = smul.u32 4, %s27
      %s285 = smul.u32 %s27, 256
      loop: start=0, step=1, limit=256
      $region45: #{tpu_custom_call.1} parent=43 // loop_pre_header
        _
      $region46: #{tpu_custom_call.1} parent=43 // loop_header
        %s287 = sphi 0, %s291
        %p288 = scmp.ge.s32.totalorder %s287, 256
      $region47: #{tpu_custom_call.1} parent=43 // loop_header_branch
        %290 = sbr.rel (%p288) target = $region51
      $region48: #{tpu_custom_call.1} parent=43 // loop_body
        %s292 = sadd.s32 %s285, %s287
        %s293 = sld [smem:[#allocation5 + %s292]]
        %s294 = scalar_lea.vmem %s1, %s293
        %s295 = scalar_lea.vmem [#allocation2], %s287
        // Predicated region
        $region52: #{tpu_custom_call.1} parent=48 // pred_check
          _
        $region53: #{tpu_custom_call.1} parent=48 // pred_check_branch
          %297 = sbr.rel target = $region55
        $region54: #{tpu_custom_call.1} parent=48 // pred_region
          // Predicated region
          $region67: #{tpu_custom_call.1} parent=54 // pred_check
            _
          $region68: #{tpu_custom_call.1} parent=54 // pred_check_branch
            %313 = sbr.rel (0) target = $region70
          $region69: #{tpu_custom_call.1} parent=54 // pred_region
            %s315 = ssub.s32 2, 1
            loop: start=0, step=1, limit=1
            $region71: #{tpu_custom_call.1} parent=69 // loop_pre_header
              _
            $region72: #{tpu_custom_call.1} parent=69 // loop_header
              %s317 = sphi 0, %s321
              %p318 = scmp.ge.s32.totalorder %s317, 1
              %s322 = sphi %s294, %s294
              %s323 = sphi %s295, %s295
            $region73: #{tpu_custom_call.1} parent=69 // loop_header_branch
              %320 = sbr.rel (%p318) target = $region77
            $region74: #{tpu_custom_call.1} parent=69 // loop_body
              %v324 = vld [vmem:[%s322] sm:%s315]
              %325 = vst [vmem:[%s323] sm:%s315] %v324
            $region75: #{tpu_custom_call.1} parent=69 // loop_footer
              %s321 = sadd.s32 1, %s317
            $region76: #{tpu_custom_call.1} parent=69 // loop_footer_branch
              %316 = sbr.rel target = $region72
            $region77: #{tpu_custom_call.1} parent=69 // loop_exit
              _
          $region70: #{tpu_custom_call.1} parent=54 // pred_fallthru
            _
        $region55: #{tpu_custom_call.1} parent=48 // pred_fallthru
          _
        // Predicated region
        $region56: #{tpu_custom_call.1} parent=48 // pred_check
          _
        $region57: #{tpu_custom_call.1} parent=48 // pred_check_branch
          %299 = sbr.rel (0) target = $region59
        $region58: #{tpu_custom_call.1} parent=48 // pred_region
          %s301 = ssub.s32 2, 1
          loop: start=0, step=1, limit=1
          $region60: #{tpu_custom_call.1} parent=58 // loop_pre_header
            _
          $region61: #{tpu_custom_call.1} parent=58 // loop_header
            %s303 = sphi 0, %s307
            %p304 = scmp.ge.s32.totalorder %s303, 1
            %s308 = sphi %s294, %s294
            %s309 = sphi %s295, %s295
          $region62: #{tpu_custom_call.1} parent=58 // loop_header_branch
            %306 = sbr.rel (%p304) target = $region66
          $region63: #{tpu_custom_call.1} parent=58 // loop_body
            %v310 = vld [vmem:[%s308] sm:%s301]
            %311 = vst [vmem:[%s309] sm:%s301] %v310
          $region64: #{tpu_custom_call.1} parent=58 // loop_footer
            %s307 = sadd.s32 1, %s303
          $region65: #{tpu_custom_call.1} parent=58 // loop_footer_branch
            %302 = sbr.rel target = $region61
          $region66: #{tpu_custom_call.1} parent=58 // loop_exit
            _
        $region59: #{tpu_custom_call.1} parent=48 // pred_fallthru
          _
        // Predicated region
        $region78: #{tpu_custom_call.1} parent=48 // pred_check
          _
        $region79: #{tpu_custom_call.1} parent=48 // pred_check_branch
          %328 = sbr.rel (0) target = $region81
        $region80: #{tpu_custom_call.1} parent=48 // pred_region
          %329 = vsyncadd [#allocation3], 16
        $region81: #{tpu_custom_call.1} parent=48 // pred_fallthru
          _
      $region49: #{tpu_custom_call.1} parent=43 // loop_footer
        %s291 = sadd.s32 1, %s287
      $region50: #{tpu_custom_call.1} parent=43 // loop_footer_branch
        %286 = sbr.rel target = $region46
      $region51: #{tpu_custom_call.1} parent=43 // loop_exit
        _
      loop: start=0, step=1, limit=256
      $region82: #{tpu_custom_call.1} parent=43 // loop_pre_header
        _
      $region83: #{tpu_custom_call.1} parent=43 // loop_header
        %s331 = sphi 0, %s335
        %p332 = scmp.ge.s32.totalorder %s331, 256
      $region84: #{tpu_custom_call.1} parent=43 // loop_header_branch
        %334 = sbr.rel (%p332) target = $region88
      $region85: #{tpu_custom_call.1} parent=43 // loop_body
        %s336 = smul.u32 1, 1
        %s337 = sshll.u32 %s336, 4
        %338 = dma.done [#allocation3], %s337
      $region86: #{tpu_custom_call.1} parent=43 // loop_footer
        %s335 = sadd.s32 1, %s331
      $region87: #{tpu_custom_call.1} parent=43 // loop_footer_branch
        %330 = sbr.rel target = $region83
      $region88: #{tpu_custom_call.1} parent=43 // loop_exit
        _
      %v339 = vld [vmem:[#allocation2] sm:$0xff]
      %v340 = vld [vmem:[#allocation2 + $0x8] sm:$0xff]
      %v341 = vld [vmem:[#allocation2 + $0x10] sm:$0xff]
      %v342 = vld [vmem:[#allocation2 + $0x18] sm:$0xff]
      %v343 = vld [vmem:[#allocation2 + $0x20] sm:$0xff]
      %v344 = vld [vmem:[#allocation2 + $0x28] sm:$0xff]
      %v345 = vld [vmem:[#allocation2 + $0x30] sm:$0xff]
      %v346 = vld [vmem:[#allocation2 + $0x38] sm:$0xff]
      %v347 = vld [vmem:[#allocation2 + $0x40] sm:$0xff]
      %v348 = vld [vmem:[#allocation2 + $0x48] sm:$0xff]
      %v349 = vld [vmem:[#allocation2 + $0x50] sm:$0xff]
      %v350 = vld [vmem:[#allocation2 + $0x58] sm:$0xff]
      %v351 = vld [vmem:[#allocation2 + $0x60] sm:$0xff]
      %v352 = vld [vmem:[#allocation2 + $0x68] sm:$0xff]
      %v353 = vld [vmem:[#allocation2 + $0x70] sm:$0xff]
      %v354 = vld [vmem:[#allocation2 + $0x78] sm:$0xff]
      %v355 = vld [vmem:[#allocation2 + $0x80] sm:$0xff]
      %v356 = vld [vmem:[#allocation2 + $0x88] sm:$0xff]
      %v357 = vld [vmem:[#allocation2 + $0x90] sm:$0xff]
      %v358 = vld [vmem:[#allocation2 + $0x98] sm:$0xff]
      %v359 = vld [vmem:[#allocation2 + $0xa0] sm:$0xff]
      %v360 = vld [vmem:[#allocation2 + $0xa8] sm:$0xff]
      %v361 = vld [vmem:[#allocation2 + $0xb0] sm:$0xff]
      %v362 = vld [vmem:[#allocation2 + $0xb8] sm:$0xff]
      %v363 = vld [vmem:[#allocation2 + $0xc0] sm:$0xff]
      %v364 = vld [vmem:[#allocation2 + $0xc8] sm:$0xff]
      %v365 = vld [vmem:[#allocation2 + $0xd0] sm:$0xff]
      %v366 = vld [vmem:[#allocation2 + $0xd8] sm:$0xff]
      %v367 = vld [vmem:[#allocation2 + $0xe0] sm:$0xff]
      %v368 = vld [vmem:[#allocation2 + $0xe8] sm:$0xff]
      %v369 = vld [vmem:[#allocation2 + $0xf0] sm:$0xff]
      %v370 = vld [vmem:[#allocation2 + $0xf8] sm:$0xff]
      %v371 = vpack.c.bf16 %v340, %v339
      %v372 = vpack.c.bf16 %v342, %v341
      %v373 = vpack.c.bf16 %v344, %v343
      %v374 = vpack.c.bf16 %v346, %v345
      %v375 = vpack.c.bf16 %v348, %v347
      %v376 = vpack.c.bf16 %v350, %v349
      %v377 = vpack.c.bf16 %v352, %v351
      %v378 = vpack.c.bf16 %v354, %v353
      %v379 = vpack.c.bf16 %v356, %v355
      %v380 = vpack.c.bf16 %v358, %v357
      %v381 = vpack.c.bf16 %v360, %v359
      %v382 = vpack.c.bf16 %v362, %v361
      %v383 = vpack.c.bf16 %v364, %v363
      %v384 = vpack.c.bf16 %v366, %v365
      %v385 = vpack.c.bf16 %v368, %v367
      %v386 = vpack.c.bf16 %v370, %v369
      %v387 = vld [vmem:[%s4] sm:$0xf]
      %v388 = vld [vmem:[%s4 + $0x4] sm:$0xf]
      %v389 = vld [vmem:[%s4 + $0x8] sm:$0xf]
      %v390 = vld [vmem:[%s4 + $0xc] sm:$0xf]
      %v395 = vunpack.c.l.b16 %v387
      %v396 = vunpack.c.l.b16 %v388
      %v397 = vunpack.c.l.b16 %v389
      %v398 = vunpack.c.l.b16 %v390
      %v399 = vpack.c.b16 %v396, %v395
      %v400 = vpack.c.b16 %v398, %v397
      %vm403 = vcmask 261120
      %v405 = vsel %vm403, %v371, 0
      %v408 = vsel %vm403, %v372, 0
      %v411 = vsel %vm403, %v373, 0
      %v414 = vsel %vm403, %v374, 0
      %v417 = vsel %vm403, %v375, 0
      %v420 = vsel %vm403, %v376, 0
      %v423 = vsel %vm403, %v377, 0
      %v426 = vsel %vm403, %v378, 0
      %v429 = vsel %vm403, %v379, 0
      %v432 = vsel %vm403, %v380, 0
      %v435 = vsel %vm403, %v381, 0
      %v438 = vsel %vm403, %v382, 0
      %v441 = vsel %vm403, %v383, 0
      %v444 = vsel %vm403, %v384, 0
      %v447 = vsel %vm403, %v385, 0
      %v450 = vsel %vm403, %v386, 0
      %452 = vmatpush.bf16.msra.mxu0 0
      %453 = vmatpush.bf16.msra.mxu0 0
      %454 = vmatpush.bf16.msra.mxu0 0
      %455 = vmatpush.bf16.msra.mxu0 0
      %456 = vmatpush.bf16.msra.mxu0 0
      %457 = vmatpush.bf16.msra.mxu0 0
      %458 = vmatpush.bf16.msra.mxu0 %v400
      %459 = vmatpush.bf16.msra.mxu0 %v399
      %460 = vmatmul.bf16.gmra.mxu0 %v405
      %v461 = vpop.f32.mrf.mxu0
      %v462 = vadd.f32 0.0, %v461
      %v463 = vpop.f32.mrf.mxu0
      %v464 = vadd.f32 0.0, %v463
      %465 = vmatmul.bf16.gmra.mxu0 %v408
      %v466 = vpop.f32.mrf.mxu0
      %v467 = vadd.f32 0.0, %v466
      %v468 = vpop.f32.mrf.mxu0
      %v469 = vadd.f32 0.0, %v468
      %470 = vmatmul.bf16.gmra.mxu0 %v411
      %v471 = vpop.f32.mrf.mxu0
      %v472 = vadd.f32 0.0, %v471
      %v473 = vpop.f32.mrf.mxu0
      %v474 = vadd.f32 0.0, %v473
      %475 = vmatmul.bf16.gmra.mxu0 %v414
      %v476 = vpop.f32.mrf.mxu0
      %v477 = vadd.f32 0.0, %v476
      %v478 = vpop.f32.mrf.mxu0
      %v479 = vadd.f32 0.0, %v478
      %480 = vmatmul.bf16.gmra.mxu0 %v417
      %v481 = vpop.f32.mrf.mxu0
      %v482 = vadd.f32 0.0, %v481
      %v483 = vpop.f32.mrf.mxu0
      %v484 = vadd.f32 0.0, %v483
      %485 = vmatmul.bf16.gmra.mxu0 %v420
      %v486 = vpop.f32.mrf.mxu0
      %v487 = vadd.f32 0.0, %v486
      %v488 = vpop.f32.mrf.mxu0
      %v489 = vadd.f32 0.0, %v488
      %490 = vmatmul.bf16.gmra.mxu0 %v423
      %v491 = vpop.f32.mrf.mxu0
      %v492 = vadd.f32 0.0, %v491
      %v493 = vpop.f32.mrf.mxu0
      %v494 = vadd.f32 0.0, %v493
      %495 = vmatmul.bf16.gmra.mxu0 %v426
      %v496 = vpop.f32.mrf.mxu0
      %v497 = vadd.f32 0.0, %v496
      %v498 = vpop.f32.mrf.mxu0
      %v499 = vadd.f32 0.0, %v498
      %500 = vmatmul.bf16.gmra.mxu0 %v429
      %v501 = vpop.f32.mrf.mxu0
      %v502 = vadd.f32 0.0, %v501
      %v503 = vpop.f32.mrf.mxu0
      %v504 = vadd.f32 0.0, %v503
      %505 = vmatmul.bf16.gmra.mxu0 %v432
      %v506 = vpop.f32.mrf.mxu0
      %v507 = vadd.f32 0.0, %v506
      %v508 = vpop.f32.mrf.mxu0
      %v509 = vadd.f32 0.0, %v508
      %510 = vmatmul.bf16.gmra.mxu0 %v435
      %v511 = vpop.f32.mrf.mxu0
      %v512 = vadd.f32 0.0, %v511
      %v513 = vpop.f32.mrf.mxu0
      %v514 = vadd.f32 0.0, %v513
      %515 = vmatmul.bf16.gmra.mxu0 %v438
      %v516 = vpop.f32.mrf.mxu0
      %v517 = vadd.f32 0.0, %v516
      %v518 = vpop.f32.mrf.mxu0
      %v519 = vadd.f32 0.0, %v518
      %520 = vmatmul.bf16.gmra.mxu0 %v441
      %v521 = vpop.f32.mrf.mxu0
      %v522 = vadd.f32 0.0, %v521
      %v523 = vpop.f32.mrf.mxu0
      %v524 = vadd.f32 0.0, %v523
      %525 = vmatmul.bf16.gmra.mxu0 %v444
      %v526 = vpop.f32.mrf.mxu0
      %v527 = vadd.f32 0.0, %v526
      %v528 = vpop.f32.mrf.mxu0
      %v529 = vadd.f32 0.0, %v528
      %530 = vmatmul.bf16.gmra.mxu0 %v447
      %v531 = vpop.f32.mrf.mxu0
      %v532 = vadd.f32 0.0, %v531
      %v533 = vpop.f32.mrf.mxu0
      %v534 = vadd.f32 0.0, %v533
      %535 = vmatmul.bf16.gmra.mxu0 %v450
      %v536 = vpop.f32.mrf.mxu0
      %v537 = vadd.f32 0.0, %v536
      %v538 = vpop.f32.mrf.mxu0
      %v539 = vadd.f32 0.0, %v538
      %540 = vdwg.mxu0
      %v541 = vld [vmem:[%s270] sm:$0x1]
      %v542 = vld [vmem:[%s270 + $0x1] sm:$0x1]
      %v543 = vld [vmem:[%s270 + $0x2] sm:$0x1]
      %v544 = vld [vmem:[%s270 + $0x3] sm:$0x1]
      %v545 = vld [vmem:[%s270 + $0x4] sm:$0x1]
      %v546 = vld [vmem:[%s270 + $0x5] sm:$0x1]
      %v547 = vld [vmem:[%s270 + $0x6] sm:$0x1]
      %v548 = vld [vmem:[%s270 + $0x7] sm:$0x1]
      %v549 = vld [vmem:[%s270 + $0x8] sm:$0x1]
      %v550 = vld [vmem:[%s270 + $0x9] sm:$0x1]
      %v551 = vld [vmem:[%s270 + $0xa] sm:$0x1]
      %v552 = vld [vmem:[%s270 + $0xb] sm:$0x1]
      %v553 = vld [vmem:[%s270 + $0xc] sm:$0x1]
      %v554 = vld [vmem:[%s270 + $0xd] sm:$0x1]
      %v555 = vld [vmem:[%s270 + $0xe] sm:$0x1]
      %v556 = vld [vmem:[%s270 + $0xf] sm:$0x1]
      %v557 = vld [vmem:[%s270 + $0x10] sm:$0x1]
      %v558 = vld [vmem:[%s270 + $0x11] sm:$0x1]
      %v559 = vld [vmem:[%s270 + $0x12] sm:$0x1]
      %v560 = vld [vmem:[%s270 + $0x13] sm:$0x1]
      %v561 = vld [vmem:[%s270 + $0x14] sm:$0x1]
      %v562 = vld [vmem:[%s270 + $0x15] sm:$0x1]
      %v563 = vld [vmem:[%s270 + $0x16] sm:$0x1]
      %v564 = vld [vmem:[%s270 + $0x17] sm:$0x1]
      %v565 = vld [vmem:[%s270 + $0x18] sm:$0x1]
      %v566 = vld [vmem:[%s270 + $0x19] sm:$0x1]
      %v567 = vld [vmem:[%s270 + $0x1a] sm:$0x1]
      %v568 = vld [vmem:[%s270 + $0x1b] sm:$0x1]
      %v569 = vld [vmem:[%s270 + $0x1c] sm:$0x1]
      %v570 = vld [vmem:[%s270 + $0x1d] sm:$0x1]
      %v571 = vld [vmem:[%s270 + $0x1e] sm:$0x1]
      %v572 = vld [vmem:[%s270 + $0x1f] sm:$0x1]
      %v605 = vperm.slane %v541, 0
      %v606 = vperm.slane %v542, 0
      %v607 = vperm.slane %v543, 0
      %v608 = vperm.slane %v544, 0
      %v609 = vperm.slane %v545, 0
      %v610 = vperm.slane %v546, 0
      %v611 = vperm.slane %v547, 0
      %v612 = vperm.slane %v548, 0
      %v613 = vperm.slane %v549, 0
      %v614 = vperm.slane %v550, 0
      %v615 = vperm.slane %v551, 0
      %v616 = vperm.slane %v552, 0
      %v617 = vperm.slane %v553, 0
      %v618 = vperm.slane %v554, 0
      %v619 = vperm.slane %v555, 0
      %v620 = vperm.slane %v556, 0
      %v621 = vperm.slane %v557, 0
      %v622 = vperm.slane %v558, 0
      %v623 = vperm.slane %v559, 0
      %v624 = vperm.slane %v560, 0
      %v625 = vperm.slane %v561, 0
      %v626 = vperm.slane %v562, 0
      %v627 = vperm.slane %v563, 0
      %v628 = vperm.slane %v564, 0
      %v629 = vperm.slane %v565, 0
      %v630 = vperm.slane %v566, 0
      %v631 = vperm.slane %v567, 0
      %v632 = vperm.slane %v568, 0
      %v633 = vperm.slane %v569, 0
      %v634 = vperm.slane %v570, 0
      %v635 = vperm.slane %v571, 0
      %v636 = vperm.slane %v572, 0
      %v669 = vadd.f32 %v462, %v605
      %v670 = vadd.f32 %v464, %v606
      %v671 = vadd.f32 %v467, %v607
      %v672 = vadd.f32 %v469, %v608
      %v673 = vadd.f32 %v472, %v609
      %v674 = vadd.f32 %v474, %v610
      %v675 = vadd.f32 %v477, %v611
      %v676 = vadd.f32 %v479, %v612
      %v677 = vadd.f32 %v482, %v613
      %v678 = vadd.f32 %v484, %v614
      %v679 = vadd.f32 %v487, %v615
      %v680 = vadd.f32 %v489, %v616
      %v681 = vadd.f32 %v492, %v617
      %v682 = vadd.f32 %v494, %v618
      %v683 = vadd.f32 %v497, %v619
      %v684 = vadd.f32 %v499, %v620
      %v685 = vadd.f32 %v502, %v621
      %v686 = vadd.f32 %v504, %v622
      %v687 = vadd.f32 %v507, %v623
      %v688 = vadd.f32 %v509, %v624
      %v689 = vadd.f32 %v512, %v625
      %v690 = vadd.f32 %v514, %v626
      %v691 = vadd.f32 %v517, %v627
      %v692 = vadd.f32 %v519, %v628
      %v693 = vadd.f32 %v522, %v629
      %v694 = vadd.f32 %v524, %v630
      %v695 = vadd.f32 %v527, %v631
      %v696 = vadd.f32 %v529, %v632
      %v697 = vadd.f32 %v532, %v633
      %v698 = vadd.f32 %v534, %v634
      %v699 = vadd.f32 %v537, %v635
      %v700 = vadd.f32 %v539, %v636
      %v701 = vmax.f32 %v669, 0.0
      %v702 = vmax.f32 %v670, 0.0
      %v703 = vmax.f32 %v671, 0.0
      %v704 = vmax.f32 %v672, 0.0
      %v705 = vmax.f32 %v673, 0.0
      %v706 = vmax.f32 %v674, 0.0
      %v707 = vmax.f32 %v675, 0.0
      %v708 = vmax.f32 %v676, 0.0
      %v709 = vmax.f32 %v677, 0.0
      %v710 = vmax.f32 %v678, 0.0
      %v711 = vmax.f32 %v679, 0.0
      %v712 = vmax.f32 %v680, 0.0
      %v713 = vmax.f32 %v681, 0.0
      %v714 = vmax.f32 %v682, 0.0
      %v715 = vmax.f32 %v683, 0.0
      %v716 = vmax.f32 %v684, 0.0
      %v717 = vmax.f32 %v685, 0.0
      %v718 = vmax.f32 %v686, 0.0
      %v719 = vmax.f32 %v687, 0.0
      %v720 = vmax.f32 %v688, 0.0
      %v721 = vmax.f32 %v689, 0.0
      %v722 = vmax.f32 %v690, 0.0
      %v723 = vmax.f32 %v691, 0.0
      %v724 = vmax.f32 %v692, 0.0
      %v725 = vmax.f32 %v693, 0.0
      %v726 = vmax.f32 %v694, 0.0
      %v727 = vmax.f32 %v695, 0.0
      %v728 = vmax.f32 %v696, 0.0
      %v729 = vmax.f32 %v697, 0.0
      %v730 = vmax.f32 %v698, 0.0
      %v731 = vmax.f32 %v699, 0.0
      %v732 = vmax.f32 %v700, 0.0
      %v733 = vpack.c.bf16 %v702, %v701
      %v734 = vpack.c.bf16 %v704, %v703
      %v735 = vpack.c.bf16 %v706, %v705
      %v736 = vpack.c.bf16 %v708, %v707
      %v737 = vpack.c.bf16 %v710, %v709
      %v738 = vpack.c.bf16 %v712, %v711
      %v739 = vpack.c.bf16 %v714, %v713
      %v740 = vpack.c.bf16 %v716, %v715
      %v741 = vpack.c.bf16 %v718, %v717
      %v742 = vpack.c.bf16 %v720, %v719
      %v743 = vpack.c.bf16 %v722, %v721
      %v744 = vpack.c.bf16 %v724, %v723
      %v745 = vpack.c.bf16 %v726, %v725
      %v746 = vpack.c.bf16 %v728, %v727
      %v747 = vpack.c.bf16 %v730, %v729
      %v748 = vpack.c.bf16 %v732, %v731
      %v749 = vld [vmem:[%s5] sm:$0xf]
      %v750 = vld [vmem:[%s5 + $0x4] sm:$0xf]
      %v751 = vld [vmem:[%s5 + $0x8] sm:$0xf]
      %v752 = vld [vmem:[%s5 + $0xc] sm:$0xf]
      %v753 = vld [vmem:[%s6] sm:$0x1]
      %v755 = vperm.slane %v753, 0
      %v761 = vunpack.c.l.b16 %v749
      %v762 = vunpack.c.l.b16 %v750
      %v763 = vunpack.c.l.b16 %v751
      %v764 = vunpack.c.l.b16 %v752
      %v765 = vpack.c.b16 %v762, %v761
      %v766 = vpack.c.b16 %v764, %v763
      %v770 = vsel %vm403, %v733, 0
      %v773 = vsel %vm403, %v734, 0
      %v776 = vsel %vm403, %v735, 0
      %v779 = vsel %vm403, %v736, 0
      %v782 = vsel %vm403, %v737, 0
      %v785 = vsel %vm403, %v738, 0
      %v788 = vsel %vm403, %v739, 0
      %v791 = vsel %vm403, %v740, 0
      %v794 = vsel %vm403, %v741, 0
      %v797 = vsel %vm403, %v742, 0
      %v800 = vsel %vm403, %v743, 0
      %v803 = vsel %vm403, %v744, 0
      %v806 = vsel %vm403, %v745, 0
      %v809 = vsel %vm403, %v746, 0
      %v812 = vsel %vm403, %v747, 0
      %v815 = vsel %vm403, %v748, 0
      %817 = vmatpush.bf16.msra.mxu0 0
      %818 = vmatpush.bf16.msra.mxu0 0
      %819 = vmatpush.bf16.msra.mxu0 0
      %820 = vmatpush.bf16.msra.mxu0 0
      %821 = vmatpush.bf16.msra.mxu0 0
      %822 = vmatpush.bf16.msra.mxu0 0
      %823 = vmatpush.bf16.msra.mxu0 %v766
      %824 = vmatpush.bf16.msra.mxu0 %v765
      %825 = vmatmul.bf16.gmra.mxu0 %v770
      %v826 = vpop.f32.mrf.mxu0
      %v827 = vadd.f32 %v755, %v826
      %v828 = vpop.f32.mrf.mxu0
      %v829 = vadd.f32 %v755, %v828
      %830 = vmatmul.bf16.gmra.mxu0 %v773
      %v831 = vpop.f32.mrf.mxu0
      %v832 = vadd.f32 %v755, %v831
      %v833 = vpop.f32.mrf.mxu0
      %v834 = vadd.f32 %v755, %v833
      %835 = vmatmul.bf16.gmra.mxu0 %v776
      %v836 = vpop.f32.mrf.mxu0
      %v837 = vadd.f32 %v755, %v836
      %v838 = vpop.f32.mrf.mxu0
      %v839 = vadd.f32 %v755, %v838
      %840 = vmatmul.bf16.gmra.mxu0 %v779
      %v841 = vpop.f32.mrf.mxu0
      %v842 = vadd.f32 %v755, %v841
      %v843 = vpop.f32.mrf.mxu0
      %v844 = vadd.f32 %v755, %v843
      %845 = vmatmul.bf16.gmra.mxu0 %v782
      %v846 = vpop.f32.mrf.mxu0
      %v847 = vadd.f32 %v755, %v846
      %v848 = vpop.f32.mrf.mxu0
      %v849 = vadd.f32 %v755, %v848
      %850 = vmatmul.bf16.gmra.mxu0 %v785
      %v851 = vpop.f32.mrf.mxu0
      %v852 = vadd.f32 %v755, %v851
      %v853 = vpop.f32.mrf.mxu0
      %v854 = vadd.f32 %v755, %v853
      %855 = vmatmul.bf16.gmra.mxu0 %v788
      %v856 = vpop.f32.mrf.mxu0
      %v857 = vadd.f32 %v755, %v856
      %v858 = vpop.f32.mrf.mxu0
      %v859 = vadd.f32 %v755, %v858
      %860 = vmatmul.bf16.gmra.mxu0 %v791
      %v861 = vpop.f32.mrf.mxu0
      %v862 = vadd.f32 %v755, %v861
      %v863 = vpop.f32.mrf.mxu0
      %v864 = vadd.f32 %v755, %v863
      %865 = vmatmul.bf16.gmra.mxu0 %v794
      %v866 = vpop.f32.mrf.mxu0
      %v867 = vadd.f32 %v755, %v866
      %v868 = vpop.f32.mrf.mxu0
      %v869 = vadd.f32 %v755, %v868
      %870 = vmatmul.bf16.gmra.mxu0 %v797
      %v871 = vpop.f32.mrf.mxu0
      %v872 = vadd.f32 %v755, %v871
      %v873 = vpop.f32.mrf.mxu0
      %v874 = vadd.f32 %v755, %v873
      %875 = vmatmul.bf16.gmra.mxu0 %v800
      %v876 = vpop.f32.mrf.mxu0
      %v877 = vadd.f32 %v755, %v876
      %v878 = vpop.f32.mrf.mxu0
      %v879 = vadd.f32 %v755, %v878
      %880 = vmatmul.bf16.gmra.mxu0 %v803
      %v881 = vpop.f32.mrf.mxu0
      %v882 = vadd.f32 %v755, %v881
      %v883 = vpop.f32.mrf.mxu0
      %v884 = vadd.f32 %v755, %v883
      %885 = vmatmul.bf16.gmra.mxu0 %v806
      %v886 = vpop.f32.mrf.mxu0
      %v887 = vadd.f32 %v755, %v886
      %v888 = vpop.f32.mrf.mxu0
      %v889 = vadd.f32 %v755, %v888
      %890 = vmatmul.bf16.gmra.mxu0 %v809
      %v891 = vpop.f32.mrf.mxu0
      %v892 = vadd.f32 %v755, %v891
      %v893 = vpop.f32.mrf.mxu0
      %v894 = vadd.f32 %v755, %v893
      %895 = vmatmul.bf16.gmra.mxu0 %v812
      %v896 = vpop.f32.mrf.mxu0
      %v897 = vadd.f32 %v755, %v896
      %v898 = vpop.f32.mrf.mxu0
      %v899 = vadd.f32 %v755, %v898
      %900 = vmatmul.bf16.gmra.mxu0 %v815
      %v901 = vpop.f32.mrf.mxu0
      %v902 = vadd.f32 %v755, %v901
      %v903 = vpop.f32.mrf.mxu0
      %v904 = vadd.f32 %v755, %v903
      %905 = vdwg.mxu0
      %v906 = vmax.f32 %v827, 0.0
      %v907 = vmax.f32 %v829, 0.0
      %v908 = vmax.f32 %v832, 0.0
      %v909 = vmax.f32 %v834, 0.0
      %v910 = vmax.f32 %v837, 0.0
      %v911 = vmax.f32 %v839, 0.0
      %v912 = vmax.f32 %v842, 0.0
      %v913 = vmax.f32 %v844, 0.0
      %v914 = vmax.f32 %v847, 0.0
      %v915 = vmax.f32 %v849, 0.0
      %v916 = vmax.f32 %v852, 0.0
      %v917 = vmax.f32 %v854, 0.0
      %v918 = vmax.f32 %v857, 0.0
      %v919 = vmax.f32 %v859, 0.0
      %v920 = vmax.f32 %v862, 0.0
      %v921 = vmax.f32 %v864, 0.0
      %v922 = vmax.f32 %v867, 0.0
      %v923 = vmax.f32 %v869, 0.0
      %v924 = vmax.f32 %v872, 0.0
      %v925 = vmax.f32 %v874, 0.0
      %v926 = vmax.f32 %v877, 0.0
      %v927 = vmax.f32 %v879, 0.0
      %v928 = vmax.f32 %v882, 0.0
      %v929 = vmax.f32 %v884, 0.0
      %v930 = vmax.f32 %v887, 0.0
      %v931 = vmax.f32 %v889, 0.0
      %v932 = vmax.f32 %v892, 0.0
      %v933 = vmax.f32 %v894, 0.0
      %v934 = vmax.f32 %v897, 0.0
      %v935 = vmax.f32 %v899, 0.0
      %v936 = vmax.f32 %v902, 0.0
      %v937 = vmax.f32 %v904, 0.0
      %v938 = vld [vmem:[%s7] sm:$0x1]
      %v940 = vperm.slane %v938, 0
      %v942 = vmul.f32 %v906, %v940
      %v943 = vmul.f32 %v907, %v940
      %v944 = vmul.f32 %v908, %v940
      %v945 = vmul.f32 %v909, %v940
      %v946 = vmul.f32 %v910, %v940
      %v947 = vmul.f32 %v911, %v940
      %v948 = vmul.f32 %v912, %v940
      %v949 = vmul.f32 %v913, %v940
      %v950 = vmul.f32 %v914, %v940
      %v951 = vmul.f32 %v915, %v940
      %v952 = vmul.f32 %v916, %v940
      %v953 = vmul.f32 %v917, %v940
      %v954 = vmul.f32 %v918, %v940
      %v955 = vmul.f32 %v919, %v940
      %v956 = vmul.f32 %v920, %v940
      %v957 = vmul.f32 %v921, %v940
      %v958 = vmul.f32 %v922, %v940
      %v959 = vmul.f32 %v923, %v940
      %v960 = vmul.f32 %v924, %v940
      %v961 = vmul.f32 %v925, %v940
      %v962 = vmul.f32 %v926, %v940
      %v963 = vmul.f32 %v927, %v940
      %v964 = vmul.f32 %v928, %v940
      %v965 = vmul.f32 %v929, %v940
      %v966 = vmul.f32 %v930, %v940
      %v967 = vmul.f32 %v931, %v940
      %v968 = vmul.f32 %v932, %v940
      %v969 = vmul.f32 %v933, %v940
      %v970 = vmul.f32 %v934, %v940
      %v971 = vmul.f32 %v935, %v940
      %v972 = vmul.f32 %v936, %v940
      %v973 = vmul.f32 %v937, %v940
      %v974 = vsel %vm403, %v942, 0.0
      %975 = vadd.xlane.f32.xlu0 %v974
      %v976 = vpop.xlane.xlu0 %975
      %v977 = vsel %vm403, %v943, 0.0
      %978 = vadd.xlane.f32.xlu0 %v977
      %v979 = vpop.xlane.xlu0 %978
      %v980 = vsel %vm403, %v944, 0.0
      %981 = vadd.xlane.f32.xlu0 %v980
      %v982 = vpop.xlane.xlu0 %981
      %v983 = vsel %vm403, %v945, 0.0
      %984 = vadd.xlane.f32.xlu0 %v983
      %v985 = vpop.xlane.xlu0 %984
      %v986 = vsel %vm403, %v946, 0.0
      %987 = vadd.xlane.f32.xlu0 %v986
      %v988 = vpop.xlane.xlu0 %987
      %v989 = vsel %vm403, %v947, 0.0
      %990 = vadd.xlane.f32.xlu0 %v989
      %v991 = vpop.xlane.xlu0 %990
      %v992 = vsel %vm403, %v948, 0.0
      %993 = vadd.xlane.f32.xlu0 %v992
      %v994 = vpop.xlane.xlu0 %993
      %v995 = vsel %vm403, %v949, 0.0
      %996 = vadd.xlane.f32.xlu0 %v995
      %v997 = vpop.xlane.xlu0 %996
      %v998 = vsel %vm403, %v950, 0.0
      %999 = vadd.xlane.f32.xlu0 %v998
      %v1000 = vpop.xlane.xlu0 %999
      %v1001 = vsel %vm403, %v951, 0.0
      %1002 = vadd.xlane.f32.xlu0 %v1001
      %v1003 = vpop.xlane.xlu0 %1002
      %v1004 = vsel %vm403, %v952, 0.0
      %1005 = vadd.xlane.f32.xlu0 %v1004
      %v1006 = vpop.xlane.xlu0 %1005
      %v1007 = vsel %vm403, %v953, 0.0
      %1008 = vadd.xlane.f32.xlu0 %v1007
      %v1009 = vpop.xlane.xlu0 %1008
      %v1010 = vsel %vm403, %v954, 0.0
      %1011 = vadd.xlane.f32.xlu0 %v1010
      %v1012 = vpop.xlane.xlu0 %1011
      %v1013 = vsel %vm403, %v955, 0.0
      %1014 = vadd.xlane.f32.xlu0 %v1013
      %v1015 = vpop.xlane.xlu0 %1014
      %v1016 = vsel %vm403, %v956, 0.0
      %1017 = vadd.xlane.f32.xlu0 %v1016
      %v1018 = vpop.xlane.xlu0 %1017
      %v1019 = vsel %vm403, %v957, 0.0
      %1020 = vadd.xlane.f32.xlu0 %v1019
      %v1021 = vpop.xlane.xlu0 %1020
      %v1022 = vsel %vm403, %v958, 0.0
      %1023 = vadd.xlane.f32.xlu0 %v1022
      %v1024 = vpop.xlane.xlu0 %1023
      %v1025 = vsel %vm403, %v959, 0.0
      %1026 = vadd.xlane.f32.xlu0 %v1025
      %v1027 = vpop.xlane.xlu0 %1026
      %v1028 = vsel %vm403, %v960, 0.0
      %1029 = vadd.xlane.f32.xlu0 %v1028
      %v1030 = vpop.xlane.xlu0 %1029
      %v1031 = vsel %vm403, %v961, 0.0
      %1032 = vadd.xlane.f32.xlu0 %v1031
      %v1033 = vpop.xlane.xlu0 %1032
      %v1034 = vsel %vm403, %v962, 0.0
      %1035 = vadd.xlane.f32.xlu0 %v1034
      %v1036 = vpop.xlane.xlu0 %1035
      %v1037 = vsel %vm403, %v963, 0.0
      %1038 = vadd.xlane.f32.xlu0 %v1037
      %v1039 = vpop.xlane.xlu0 %1038
      %v1040 = vsel %vm403, %v964, 0.0
      %1041 = vadd.xlane.f32.xlu0 %v1040
      %v1042 = vpop.xlane.xlu0 %1041
      %v1043 = vsel %vm403, %v965, 0.0
      %1044 = vadd.xlane.f32.xlu0 %v1043
      %v1045 = vpop.xlane.xlu0 %1044
      %v1046 = vsel %vm403, %v966, 0.0
      %1047 = vadd.xlane.f32.xlu0 %v1046
      %v1048 = vpop.xlane.xlu0 %1047
      %v1049 = vsel %vm403, %v967, 0.0
      %1050 = vadd.xlane.f32.xlu0 %v1049
      %v1051 = vpop.xlane.xlu0 %1050
      %v1052 = vsel %vm403, %v968, 0.0
      %1053 = vadd.xlane.f32.xlu0 %v1052
      %v1054 = vpop.xlane.xlu0 %1053
      %v1055 = vsel %vm403, %v969, 0.0
      %1056 = vadd.xlane.f32.xlu0 %v1055
      %v1057 = vpop.xlane.xlu0 %1056
      %v1058 = vsel %vm403, %v970, 0.0
      %1059 = vadd.xlane.f32.xlu0 %v1058
      %v1060 = vpop.xlane.xlu0 %1059
      %v1061 = vsel %vm403, %v971, 0.0
      %1062 = vadd.xlane.f32.xlu0 %v1061
      %v1063 = vpop.xlane.xlu0 %1062
      %v1064 = vsel %vm403, %v972, 0.0
      %1065 = vadd.xlane.f32.xlu0 %v1064
      %v1066 = vpop.xlane.xlu0 %1065
      %v1067 = vsel %vm403, %v973, 0.0
      %1068 = vadd.xlane.f32.xlu0 %v1067
      %v1069 = vpop.xlane.xlu0 %1068
      %v1070 = vlaneseq
      %v1071 = vand.u32 %v1070, 127
      %v1072 = vld [vmem:[%s276] sm:$0xff]
      %v1073 = vld [vmem:[%s276 + $0x8] sm:$0xff]
      %v1074 = vld [vmem:[%s276 + $0x10] sm:$0xff]
      %v1075 = vld [vmem:[%s276 + $0x18] sm:$0xff]
      %1076 = vset.pattern.permute.xlu0 0
      %1077 = vperm.xlu0 %1076, %v1072
      %v1078 = vpop.permute.xlu0 %1077
      %1079 = vset.pattern.permute.xlu0 0
      %1080 = vperm.xlu0 %1079, %v1073
      %v1081 = vpop.permute.xlu0 %1080
      %1082 = vset.pattern.permute.xlu0 0
      %1083 = vperm.xlu0 %1082, %v1074
      %v1084 = vpop.permute.xlu0 %1083
      %1085 = vset.pattern.permute.xlu0 0
      %1086 = vperm.xlu0 %1085, %v1075
      %v1087 = vpop.permute.xlu0 %1086
      %vm1088 = vcmp.lt.s32.totalorder %v1071, %v1078
      %vm1089 = vcmp.lt.s32.totalorder %v1071, %v1081
      %vm1090 = vcmp.lt.s32.totalorder %v1071, %v1084
      %vm1091 = vcmp.lt.s32.totalorder %v1071, %v1087
      %v1124 = vperm.slane %v976, %v1071
      %v1125 = vperm.slane %v979, %v1071
      %v1126 = vperm.slane %v982, %v1071
      %v1127 = vperm.slane %v985, %v1071
      %v1128 = vperm.slane %v988, %v1071
      %v1129 = vperm.slane %v991, %v1071
      %v1130 = vperm.slane %v994, %v1071
      %v1131 = vperm.slane %v997, %v1071
      %v1132 = vperm.slane %v1000, %v1071
      %v1133 = vperm.slane %v1003, %v1071
      %v1134 = vperm.slane %v1006, %v1071
      %v1135 = vperm.slane %v1009, %v1071
      %v1136 = vperm.slane %v1012, %v1071
      %v1137 = vperm.slane %v1015, %v1071
      %v1138 = vperm.slane %v1018, %v1071
      %v1139 = vperm.slane %v1021, %v1071
      %v1140 = vperm.slane %v1024, %v1071
      %v1141 = vperm.slane %v1027, %v1071
      %v1142 = vperm.slane %v1030, %v1071
      %v1143 = vperm.slane %v1033, %v1071
      %v1144 = vperm.slane %v1036, %v1071
      %v1145 = vperm.slane %v1039, %v1071
      %v1146 = vperm.slane %v1042, %v1071
      %v1147 = vperm.slane %v1045, %v1071
      %v1148 = vperm.slane %v1048, %v1071
      %v1149 = vperm.slane %v1051, %v1071
      %v1150 = vperm.slane %v1054, %v1071
      %v1151 = vperm.slane %v1057, %v1071
      %v1152 = vperm.slane %v1060, %v1071
      %v1153 = vperm.slane %v1063, %v1071
      %v1154 = vperm.slane %v1066, %v1071
      %v1155 = vperm.slane %v1069, %v1071
      %vm1156 = vcmask 1041409
      %v1157 = vsel %vm1156, %v1125, %v1124
      %vm1158 = vcmask 1042434
      %v1159 = vsel %vm1158, %v1126, %v1157
      %vm1160 = vcmask 1043459
      %v1161 = vsel %vm1160, %v1127, %v1159
      %vm1162 = vcmask 1044484
      %v1163 = vsel %vm1162, %v1128, %v1161
      %vm1164 = vcmask 1045509
      %v1165 = vsel %vm1164, %v1129, %v1163
      %vm1166 = vcmask 1046534
      %v1167 = vsel %vm1166, %v1130, %v1165
      %vm1168 = vcmask 1047559
      %v1169 = vsel %vm1168, %v1131, %v1167
      %v1170 = vsel %vm1156, %v1133, %v1132
      %v1171 = vsel %vm1158, %v1134, %v1170
      %v1172 = vsel %vm1160, %v1135, %v1171
      %v1173 = vsel %vm1162, %v1136, %v1172
      %v1174 = vsel %vm1164, %v1137, %v1173
      %v1175 = vsel %vm1166, %v1138, %v1174
      %v1176 = vsel %vm1168, %v1139, %v1175
      %v1177 = vsel %vm1156, %v1141, %v1140
      %v1178 = vsel %vm1158, %v1142, %v1177
      %v1179 = vsel %vm1160, %v1143, %v1178
      %v1180 = vsel %vm1162, %v1144, %v1179
      %v1181 = vsel %vm1164, %v1145, %v1180
      %v1182 = vsel %vm1166, %v1146, %v1181
      %v1183 = vsel %vm1168, %v1147, %v1182
      %v1184 = vsel %vm1156, %v1149, %v1148
      %v1185 = vsel %vm1158, %v1150, %v1184
      %v1186 = vsel %vm1160, %v1151, %v1185
      %v1187 = vsel %vm1162, %v1152, %v1186
      %v1188 = vsel %vm1164, %v1153, %v1187
      %v1189 = vsel %vm1166, %v1154, %v1188
      %v1190 = vsel %vm1168, %v1155, %v1189
      %v1195 = vsel %vm1088, %v1169, -1e+30
      %v1196 = vsel %vm1089, %v1176, -1e+30
      %v1197 = vsel %vm1090, %v1183, -1e+30
      %v1198 = vsel %vm1091, %v1190, -1e+30
      %vm1199 = vcmask 64512
      %v1200 = vsel %vm1199, %v1195, -inf
      %1201 = vmax.xlane.f32.xlu0 %v1200
      %v1202 = vpop.xlane.xlu0 %1201
      %v1203 = vsel %vm1199, %v1196, -inf
      %1204 = vmax.xlane.f32.xlu0 %v1203
      %v1205 = vpop.xlane.xlu0 %1204
      %v1206 = vsel %vm1199, %v1197, -inf
      %1207 = vmax.xlane.f32.xlu0 %v1206
      %v1208 = vpop.xlane.xlu0 %1207
      %v1209 = vsel %vm1199, %v1198, -inf
      %1210 = vmax.xlane.f32.xlu0 %v1209
      %v1211 = vpop.xlane.xlu0 %1210
      %v1212 = vsub.f32 %v1195, %v1202
      %v1213 = vsub.f32 %v1196, %v1205
      %v1214 = vsub.f32 %v1197, %v1208
      %v1215 = vsub.f32 %v1198, %v1211
      %v1216 = vmul.f32 %v1212, 1.442695
      %v1217 = vpow.pop %v1216
      %v1218 = vmul.f32 %v1213, 1.442695
      %v1219 = vpow.pop %v1218
      %v1220 = vmul.f32 %v1214, 1.442695
      %v1221 = vpow.pop %v1220
      %v1222 = vmul.f32 %v1215, 1.442695
      %v1223 = vpow.pop %v1222
      %v1224 = vsel %vm1199, %v1217, 0.0
      %1225 = vadd.xlane.f32.xlu0 %v1224
      %v1226 = vpop.xlane.xlu0 %1225
      %v1227 = vsel %vm1199, %v1219, 0.0
      %1228 = vadd.xlane.f32.xlu0 %v1227
      %v1229 = vpop.xlane.xlu0 %1228
      %v1230 = vsel %vm1199, %v1221, 0.0
      %1231 = vadd.xlane.f32.xlu0 %v1230
      %v1232 = vpop.xlane.xlu0 %1231
      %v1233 = vsel %vm1199, %v1223, 0.0
      %1234 = vadd.xlane.f32.xlu0 %v1233
      %v1235 = vpop.xlane.xlu0 %1234
      %v1236 = vrcp.pop %v1226
      %v1237 = vrcp.pop %v1229
      %v1238 = vrcp.pop %v1232
      %v1239 = vrcp.pop %v1235
      %v1240 = vmul.f32 %v1217, %v1236
      %v1241 = vmul.f32 %v1219, %v1237
      %v1242 = vmul.f32 %v1221, %v1238
      %v1243 = vmul.f32 %v1223, %v1239
      %v1244 = vperm.slane %v1240, 0
      %v1245 = vlaneseq
      %v1246 = vshrl.u32 %v1245, 7
      %1248 = vset.pattern.permute.xlu0 %v1246
      %1249 = vperm.xlu0 %1248, %v1244
      %v1250 = vpop.permute.xlu0 %1249
      %v1251 = vperm.slane %v1240, 1
      %v1252 = vlaneseq
      %v1253 = vshrl.u32 %v1252, 7
      %1255 = vset.pattern.permute.xlu0 %v1253
      %1256 = vperm.xlu0 %1255, %v1251
      %v1257 = vpop.permute.xlu0 %1256
      %v1258 = vperm.slane %v1240, 2
      %v1259 = vlaneseq
      %v1260 = vshrl.u32 %v1259, 7
      %1262 = vset.pattern.permute.xlu0 %v1260
      %1263 = vperm.xlu0 %1262, %v1258
      %v1264 = vpop.permute.xlu0 %1263
      %v1265 = vperm.slane %v1240, 3
      %v1266 = vlaneseq
      %v1267 = vshrl.u32 %v1266, 7
      %1269 = vset.pattern.permute.xlu0 %v1267
      %1270 = vperm.xlu0 %1269, %v1265
      %v1271 = vpop.permute.xlu0 %1270
      %v1272 = vperm.slane %v1240, 4
      %v1273 = vlaneseq
      %v1274 = vshrl.u32 %v1273, 7
      %1276 = vset.pattern.permute.xlu0 %v1274
      %1277 = vperm.xlu0 %1276, %v1272
      %v1278 = vpop.permute.xlu0 %1277
      %v1279 = vperm.slane %v1240, 5
      %v1280 = vlaneseq
      %v1281 = vshrl.u32 %v1280, 7
      %1283 = vset.pattern.permute.xlu0 %v1281
      %1284 = vperm.xlu0 %1283, %v1279
      %v1285 = vpop.permute.xlu0 %1284
      %v1286 = vperm.slane %v1240, 6
      %v1287 = vlaneseq
      %v1288 = vshrl.u32 %v1287, 7
      %1290 = vset.pattern.permute.xlu0 %v1288
      %1291 = vperm.xlu0 %1290, %v1286
      %v1292 = vpop.permute.xlu0 %1291
      %v1293 = vperm.slane %v1240, 7
      %v1294 = vlaneseq
      %v1295 = vshrl.u32 %v1294, 7
      %1297 = vset.pattern.permute.xlu0 %v1295
      %1298 = vperm.xlu0 %1297, %v1293
      %v1299 = vpop.permute.xlu0 %1298
      %v1300 = vperm.slane %v1241, 0
      %v1301 = vlaneseq
      %v1302 = vshrl.u32 %v1301, 7
      %1304 = vset.pattern.permute.xlu0 %v1302
      %1305 = vperm.xlu0 %1304, %v1300
      %v1306 = vpop.permute.xlu0 %1305
      %v1307 = vperm.slane %v1241, 1
      %v1308 = vlaneseq
      %v1309 = vshrl.u32 %v1308, 7
      %1311 = vset.pattern.permute.xlu0 %v1309
      %1312 = vperm.xlu0 %1311, %v1307
      %v1313 = vpop.permute.xlu0 %1312
      %v1314 = vperm.slane %v1241, 2
      %v1315 = vlaneseq
      %v1316 = vshrl.u32 %v1315, 7
      %1318 = vset.pattern.permute.xlu0 %v1316
      %1319 = vperm.xlu0 %1318, %v1314
      %v1320 = vpop.permute.xlu0 %1319
      %v1321 = vperm.slane %v1241, 3
      %v1322 = vlaneseq
      %v1323 = vshrl.u32 %v1322, 7
      %1325 = vset.pattern.permute.xlu0 %v1323
      %1326 = vperm.xlu0 %1325, %v1321
      %v1327 = vpop.permute.xlu0 %1326
      %v1328 = vperm.slane %v1241, 4
      %v1329 = vlaneseq
      %v1330 = vshrl.u32 %v1329, 7
      %1332 = vset.pattern.permute.xlu0 %v1330
      %1333 = vperm.xlu0 %1332, %v1328
      %v1334 = vpop.permute.xlu0 %1333
      %v1335 = vperm.slane %v1241, 5
      %v1336 = vlaneseq
      %v1337 = vshrl.u32 %v1336, 7
      %1339 = vset.pattern.permute.xlu0 %v1337
      %1340 = vperm.xlu0 %1339, %v1335
      %v1341 = vpop.permute.xlu0 %1340
      %v1342 = vperm.slane %v1241, 6
      %v1343 = vlaneseq
      %v1344 = vshrl.u32 %v1343, 7
      %1346 = vset.pattern.permute.xlu0 %v1344
      %1347 = vperm.xlu0 %1346, %v1342
      %v1348 = vpop.permute.xlu0 %1347
      %v1349 = vperm.slane %v1241, 7
      %v1350 = vlaneseq
      %v1351 = vshrl.u32 %v1350, 7
      %1353 = vset.pattern.permute.xlu0 %v1351
      %1354 = vperm.xlu0 %1353, %v1349
      %v1355 = vpop.permute.xlu0 %1354
      %v1356 = vperm.slane %v1242, 0
      %v1357 = vlaneseq
      %v1358 = vshrl.u32 %v1357, 7
      %1360 = vset.pattern.permute.xlu0 %v1358
      %1361 = vperm.xlu0 %1360, %v1356
      %v1362 = vpop.permute.xlu0 %1361
      %v1363 = vperm.slane %v1242, 1
      %v1364 = vlaneseq
      %v1365 = vshrl.u32 %v1364, 7
      %1367 = vset.pattern.permute.xlu0 %v1365
      %1368 = vperm.xlu0 %1367, %v1363
      %v1369 = vpop.permute.xlu0 %1368
      %v1370 = vperm.slane %v1242, 2
      %v1371 = vlaneseq
      %v1372 = vshrl.u32 %v1371, 7
      %1374 = vset.pattern.permute.xlu0 %v1372
      %1375 = vperm.xlu0 %1374, %v1370
      %v1376 = vpop.permute.xlu0 %1375
      %v1377 = vperm.slane %v1242, 3
      %v1378 = vlaneseq
      %v1379 = vshrl.u32 %v1378, 7
      %1381 = vset.pattern.permute.xlu0 %v1379
      %1382 = vperm.xlu0 %1381, %v1377
      %v1383 = vpop.permute.xlu0 %1382
      %v1384 = vperm.slane %v1242, 4
      %v1385 = vlaneseq
      %v1386 = vshrl.u32 %v1385, 7
      %1388 = vset.pattern.permute.xlu0 %v1386
      %1389 = vperm.xlu0 %1388, %v1384
      %v1390 = vpop.permute.xlu0 %1389
      %v1391 = vperm.slane %v1242, 5
      %v1392 = vlaneseq
      %v1393 = vshrl.u32 %v1392, 7
      %1395 = vset.pattern.permute.xlu0 %v1393
      %1396 = vperm.xlu0 %1395, %v1391
      %v1397 = vpop.permute.xlu0 %1396
      %v1398 = vperm.slane %v1242, 6
      %v1399 = vlaneseq
      %v1400 = vshrl.u32 %v1399, 7
      %1402 = vset.pattern.permute.xlu0 %v1400
      %1403 = vperm.xlu0 %1402, %v1398
      %v1404 = vpop.permute.xlu0 %1403
      %v1405 = vperm.slane %v1242, 7
      %v1406 = vlaneseq
      %v1407 = vshrl.u32 %v1406, 7
      %1409 = vset.pattern.permute.xlu0 %v1407
      %1410 = vperm.xlu0 %1409, %v1405
      %v1411 = vpop.permute.xlu0 %1410
      %v1412 = vperm.slane %v1243, 0
      %v1413 = vlaneseq
      %v1414 = vshrl.u32 %v1413, 7
      %1416 = vset.pattern.permute.xlu0 %v1414
      %1417 = vperm.xlu0 %1416, %v1412
      %v1418 = vpop.permute.xlu0 %1417
      %v1419 = vperm.slane %v1243, 1
      %v1420 = vlaneseq
      %v1421 = vshrl.u32 %v1420, 7
      %1423 = vset.pattern.permute.xlu0 %v1421
      %1424 = vperm.xlu0 %1423, %v1419
      %v1425 = vpop.permute.xlu0 %1424
      %v1426 = vperm.slane %v1243, 2
      %v1427 = vlaneseq
      %v1428 = vshrl.u32 %v1427, 7
      %1430 = vset.pattern.permute.xlu0 %v1428
      %1431 = vperm.xlu0 %1430, %v1426
      %v1432 = vpop.permute.xlu0 %1431
      %v1433 = vperm.slane %v1243, 3
      %v1434 = vlaneseq
      %v1435 = vshrl.u32 %v1434, 7
      %1437 = vset.pattern.permute.xlu0 %v1435
      %1438 = vperm.xlu0 %1437, %v1433
      %v1439 = vpop.permute.xlu0 %1438
      %v1440 = vperm.slane %v1243, 4
      %v1441 = vlaneseq
      %v1442 = vshrl.u32 %v1441, 7
      %1444 = vset.pattern.permute.xlu0 %v1442
      %1445 = vperm.xlu0 %1444, %v1440
      %v1446 = vpop.permute.xlu0 %1445
      %v1447 = vperm.slane %v1243, 5
      %v1448 = vlaneseq
      %v1449 = vshrl.u32 %v1448, 7
      %1451 = vset.pattern.permute.xlu0 %v1449
      %1452 = vperm.xlu0 %1451, %v1447
      %v1453 = vpop.permute.xlu0 %1452
      %v1454 = vperm.slane %v1243, 6
      %v1455 = vlaneseq
      %v1456 = vshrl.u32 %v1455, 7
      %1458 = vset.pattern.permute.xlu0 %v1456
      %1459 = vperm.xlu0 %1458, %v1454
      %v1460 = vpop.permute.xlu0 %1459
      %v1461 = vperm.slane %v1243, 7
      %v1462 = vlaneseq
      %v1463 = vshrl.u32 %v1462, 7
      %1465 = vset.pattern.permute.xlu0 %v1463
      %1466 = vperm.xlu0 %1465, %v1461
      %v1467 = vpop.permute.xlu0 %1466
      %v1468 = vmul.f32 %v1250, %v339
      %v1469 = vmul.f32 %v1257, %v340
      %v1470 = vmul.f32 %v1264, %v341
      %v1471 = vmul.f32 %v1271, %v342
      %v1472 = vmul.f32 %v1278, %v343
      %v1473 = vmul.f32 %v1285, %v344
      %v1474 = vmul.f32 %v1292, %v345
      %v1475 = vmul.f32 %v1299, %v346
      %v1476 = vmul.f32 %v1306, %v347
      %v1477 = vmul.f32 %v1313, %v348
      %v1478 = vmul.f32 %v1320, %v349
      %v1479 = vmul.f32 %v1327, %v350
      %v1480 = vmul.f32 %v1334, %v351
      %v1481 = vmul.f32 %v1341, %v352
      %v1482 = vmul.f32 %v1348, %v353
      %v1483 = vmul.f32 %v1355, %v354
      %v1484 = vmul.f32 %v1362, %v355
      %v1485 = vmul.f32 %v1369, %v356
      %v1486 = vmul.f32 %v1376, %v357
      %v1487 = vmul.f32 %v1383, %v358
      %v1488 = vmul.f32 %v1390, %v359
      %v1489 = vmul.f32 %v1397, %v360
      %v1490 = vmul.f32 %v1404, %v361
      %v1491 = vmul.f32 %v1411, %v362
      %v1492 = vmul.f32 %v1418, %v363
      %v1493 = vmul.f32 %v1425, %v364
      %v1494 = vmul.f32 %v1432, %v365
      %v1495 = vmul.f32 %v1439, %v366
      %v1496 = vmul.f32 %v1446, %v367
      %v1497 = vmul.f32 %v1453, %v368
      %v1498 = vmul.f32 %v1460, %v369
      %v1499 = vmul.f32 %v1467, %v370
      %v1500 = vsel %vm403, %v1468, 0.0
      %v1501 = vrot.slane %v1500, 4
      %v1502 = vadd.f32 %v1500, %v1501
      %v1503 = vrot.slane %v1502, 2
      %v1504 = vadd.f32 %v1502, %v1503
      %v1505 = vrot.slane %v1504, 1
      %v1506 = vadd.f32 %v1504, %v1505
      %v1507 = vsel %vm403, %v1469, 0.0
      %v1508 = vrot.slane %v1507, 4
      %v1509 = vadd.f32 %v1507, %v1508
      %v1510 = vrot.slane %v1509, 2
      %v1511 = vadd.f32 %v1509, %v1510
      %v1512 = vrot.slane %v1511, 1
      %v1513 = vadd.f32 %v1511, %v1512
      %v1514 = vsel %vm403, %v1470, 0.0
      %v1515 = vrot.slane %v1514, 4
      %v1516 = vadd.f32 %v1514, %v1515
      %v1517 = vrot.slane %v1516, 2
      %v1518 = vadd.f32 %v1516, %v1517
      %v1519 = vrot.slane %v1518, 1
      %v1520 = vadd.f32 %v1518, %v1519
      %v1521 = vsel %vm403, %v1471, 0.0
      %v1522 = vrot.slane %v1521, 4
      %v1523 = vadd.f32 %v1521, %v1522
      %v1524 = vrot.slane %v1523, 2
      %v1525 = vadd.f32 %v1523, %v1524
      %v1526 = vrot.slane %v1525, 1
      %v1527 = vadd.f32 %v1525, %v1526
      %v1528 = vsel %vm403, %v1472, 0.0
      %v1529 = vrot.slane %v1528, 4
      %v1530 = vadd.f32 %v1528, %v1529
      %v1531 = vrot.slane %v1530, 2
      %v1532 = vadd.f32 %v1530, %v1531
      %v1533 = vrot.slane %v1532, 1
      %v1534 = vadd.f32 %v1532, %v1533
      %v1535 = vsel %vm403, %v1473, 0.0
      %v1536 = vrot.slane %v1535, 4
      %v1537 = vadd.f32 %v1535, %v1536
      %v1538 = vrot.slane %v1537, 2
      %v1539 = vadd.f32 %v1537, %v1538
      %v1540 = vrot.slane %v1539, 1
      %v1541 = vadd.f32 %v1539, %v1540
      %v1542 = vsel %vm403, %v1474, 0.0
      %v1543 = vrot.slane %v1542, 4
      %v1544 = vadd.f32 %v1542, %v1543
      %v1545 = vrot.slane %v1544, 2
      %v1546 = vadd.f32 %v1544, %v1545
      %v1547 = vrot.slane %v1546, 1
      %v1548 = vadd.f32 %v1546, %v1547
      %v1549 = vsel %vm403, %v1475, 0.0
      %v1550 = vrot.slane %v1549, 4
      %v1551 = vadd.f32 %v1549, %v1550
      %v1552 = vrot.slane %v1551, 2
      %v1553 = vadd.f32 %v1551, %v1552
      %v1554 = vrot.slane %v1553, 1
      %v1555 = vadd.f32 %v1553, %v1554
      %v1556 = vsel %vm403, %v1476, 0.0
      %v1557 = vrot.slane %v1556, 4
      %v1558 = vadd.f32 %v1556, %v1557
      %v1559 = vrot.slane %v1558, 2
      %v1560 = vadd.f32 %v1558, %v1559
      %v1561 = vrot.slane %v1560, 1
      %v1562 = vadd.f32 %v1560, %v1561
      %v1563 = vsel %vm403, %v1477, 0.0
      %v1564 = vrot.slane %v1563, 4
      %v1565 = vadd.f32 %v1563, %v1564
      %v1566 = vrot.slane %v1565, 2
      %v1567 = vadd.f32 %v1565, %v1566
      %v1568 = vrot.slane %v1567, 1
      %v1569 = vadd.f32 %v1567, %v1568
      %v1570 = vsel %vm403, %v1478, 0.0
      %v1571 = vrot.slane %v1570, 4
      %v1572 = vadd.f32 %v1570, %v1571
      %v1573 = vrot.slane %v1572, 2
      %v1574 = vadd.f32 %v1572, %v1573
      %v1575 = vrot.slane %v1574, 1
      %v1576 = vadd.f32 %v1574, %v1575
      %v1577 = vsel %vm403, %v1479, 0.0
      %v1578 = vrot.slane %v1577, 4
      %v1579 = vadd.f32 %v1577, %v1578
      %v1580 = vrot.slane %v1579, 2
      %v1581 = vadd.f32 %v1579, %v1580
      %v1582 = vrot.slane %v1581, 1
      %v1583 = vadd.f32 %v1581, %v1582
      %v1584 = vsel %vm403, %v1480, 0.0
      %v1585 = vrot.slane %v1584, 4
      %v1586 = vadd.f32 %v1584, %v1585
      %v1587 = vrot.slane %v1586, 2
      %v1588 = vadd.f32 %v1586, %v1587
      %v1589 = vrot.slane %v1588, 1
      %v1590 = vadd.f32 %v1588, %v1589
      %v1591 = vsel %vm403, %v1481, 0.0
      %v1592 = vrot.slane %v1591, 4
      %v1593 = vadd.f32 %v1591, %v1592
      %v1594 = vrot.slane %v1593, 2
      %v1595 = vadd.f32 %v1593, %v1594
      %v1596 = vrot.slane %v1595, 1
      %v1597 = vadd.f32 %v1595, %v1596
      %v1598 = vsel %vm403, %v1482, 0.0
      %v1599 = vrot.slane %v1598, 4
      %v1600 = vadd.f32 %v1598, %v1599
      %v1601 = vrot.slane %v1600, 2
      %v1602 = vadd.f32 %v1600, %v1601
      %v1603 = vrot.slane %v1602, 1
      %v1604 = vadd.f32 %v1602, %v1603
      %v1605 = vsel %vm403, %v1483, 0.0
      %v1606 = vrot.slane %v1605, 4
      %v1607 = vadd.f32 %v1605, %v1606
      %v1608 = vrot.slane %v1607, 2
      %v1609 = vadd.f32 %v1607, %v1608
      %v1610 = vrot.slane %v1609, 1
      %v1611 = vadd.f32 %v1609, %v1610
      %v1612 = vsel %vm403, %v1484, 0.0
      %v1613 = vrot.slane %v1612, 4
      %v1614 = vadd.f32 %v1612, %v1613
      %v1615 = vrot.slane %v1614, 2
      %v1616 = vadd.f32 %v1614, %v1615
      %v1617 = vrot.slane %v1616, 1
      %v1618 = vadd.f32 %v1616, %v1617
      %v1619 = vsel %vm403, %v1485, 0.0
      %v1620 = vrot.slane %v1619, 4
      %v1621 = vadd.f32 %v1619, %v1620
      %v1622 = vrot.slane %v1621, 2
      %v1623 = vadd.f32 %v1621, %v1622
      %v1624 = vrot.slane %v1623, 1
      %v1625 = vadd.f32 %v1623, %v1624
      %v1626 = vsel %vm403, %v1486, 0.0
      %v1627 = vrot.slane %v1626, 4
      %v1628 = vadd.f32 %v1626, %v1627
      %v1629 = vrot.slane %v1628, 2
      %v1630 = vadd.f32 %v1628, %v1629
      %v1631 = vrot.slane %v1630, 1
      %v1632 = vadd.f32 %v1630, %v1631
      %v1633 = vsel %vm403, %v1487, 0.0
      %v1634 = vrot.slane %v1633, 4
      %v1635 = vadd.f32 %v1633, %v1634
      %v1636 = vrot.slane %v1635, 2
      %v1637 = vadd.f32 %v1635, %v1636
      %v1638 = vrot.slane %v1637, 1
      %v1639 = vadd.f32 %v1637, %v1638
      %v1640 = vsel %vm403, %v1488, 0.0
      %v1641 = vrot.slane %v1640, 4
      %v1642 = vadd.f32 %v1640, %v1641
      %v1643 = vrot.slane %v1642, 2
      %v1644 = vadd.f32 %v1642, %v1643
      %v1645 = vrot.slane %v1644, 1
      %v1646 = vadd.f32 %v1644, %v1645
      %v1647 = vsel %vm403, %v1489, 0.0
      %v1648 = vrot.slane %v1647, 4
      %v1649 = vadd.f32 %v1647, %v1648
      %v1650 = vrot.slane %v1649, 2
      %v1651 = vadd.f32 %v1649, %v1650
      %v1652 = vrot.slane %v1651, 1
      %v1653 = vadd.f32 %v1651, %v1652
      %v1654 = vsel %vm403, %v1490, 0.0
      %v1655 = vrot.slane %v1654, 4
      %v1656 = vadd.f32 %v1654, %v1655
      %v1657 = vrot.slane %v1656, 2
      %v1658 = vadd.f32 %v1656, %v1657
      %v1659 = vrot.slane %v1658, 1
      %v1660 = vadd.f32 %v1658, %v1659
      %v1661 = vsel %vm403, %v1491, 0.0
      %v1662 = vrot.slane %v1661, 4
      %v1663 = vadd.f32 %v1661, %v1662
      %v1664 = vrot.slane %v1663, 2
      %v1665 = vadd.f32 %v1663, %v1664
      %v1666 = vrot.slane %v1665, 1
      %v1667 = vadd.f32 %v1665, %v1666
      %v1668 = vsel %vm403, %v1492, 0.0
      %v1669 = vrot.slane %v1668, 4
      %v1670 = vadd.f32 %v1668, %v1669
      %v1671 = vrot.slane %v1670, 2
      %v1672 = vadd.f32 %v1670, %v1671
      %v1673 = vrot.slane %v1672, 1
      %v1674 = vadd.f32 %v1672, %v1673
      %v1675 = vsel %vm403, %v1493, 0.0
      %v1676 = vrot.slane %v1675, 4
      %v1677 = vadd.f32 %v1675, %v1676
      %v1678 = vrot.slane %v1677, 2
      %v1679 = vadd.f32 %v1677, %v1678
      %v1680 = vrot.slane %v1679, 1
      %v1681 = vadd.f32 %v1679, %v1680
      %v1682 = vsel %vm403, %v1494, 0.0
      %v1683 = vrot.slane %v1682, 4
      %v1684 = vadd.f32 %v1682, %v1683
      %v1685 = vrot.slane %v1684, 2
      %v1686 = vadd.f32 %v1684, %v1685
      %v1687 = vrot.slane %v1686, 1
      %v1688 = vadd.f32 %v1686, %v1687
      %v1689 = vsel %vm403, %v1495, 0.0
      %v1690 = vrot.slane %v1689, 4
      %v1691 = vadd.f32 %v1689, %v1690
      %v1692 = vrot.slane %v1691, 2
      %v1693 = vadd.f32 %v1691, %v1692
      %v1694 = vrot.slane %v1693, 1
      %v1695 = vadd.f32 %v1693, %v1694
      %v1696 = vsel %vm403, %v1496, 0.0
      %v1697 = vrot.slane %v1696, 4
      %v1698 = vadd.f32 %v1696, %v1697
      %v1699 = vrot.slane %v1698, 2
      %v1700 = vadd.f32 %v1698, %v1699
      %v1701 = vrot.slane %v1700, 1
      %v1702 = vadd.f32 %v1700, %v1701
      %v1703 = vsel %vm403, %v1497, 0.0
      %v1704 = vrot.slane %v1703, 4
      %v1705 = vadd.f32 %v1703, %v1704
      %v1706 = vrot.slane %v1705, 2
      %v1707 = vadd.f32 %v1705, %v1706
      %v1708 = vrot.slane %v1707, 1
      %v1709 = vadd.f32 %v1707, %v1708
      %v1710 = vsel %vm403, %v1498, 0.0
      %v1711 = vrot.slane %v1710, 4
      %v1712 = vadd.f32 %v1710, %v1711
      %v1713 = vrot.slane %v1712, 2
      %v1714 = vadd.f32 %v1712, %v1713
      %v1715 = vrot.slane %v1714, 1
      %v1716 = vadd.f32 %v1714, %v1715
      %v1717 = vsel %vm403, %v1499, 0.0
      %v1718 = vrot.slane %v1717, 4
      %v1719 = vadd.f32 %v1717, %v1718
      %v1720 = vrot.slane %v1719, 2
      %v1721 = vadd.f32 %v1719, %v1720
      %v1722 = vrot.slane %v1721, 1
      %v1723 = vadd.f32 %v1721, %v1722
      %v1756 = vsel %vm1156, %v1513, %v1506
      %v1757 = vsel %vm1158, %v1520, %v1756
      %v1758 = vsel %vm1160, %v1527, %v1757
      %v1759 = vsel %vm1162, %v1534, %v1758
      %v1760 = vsel %vm1164, %v1541, %v1759
      %v1761 = vsel %vm1166, %v1548, %v1760
      %v1762 = vsel %vm1168, %v1555, %v1761
      %v1763 = vsel %vm1156, %v1569, %v1562
      %v1764 = vsel %vm1158, %v1576, %v1763
      %v1765 = vsel %vm1160, %v1583, %v1764
      %v1766 = vsel %vm1162, %v1590, %v1765
      %v1767 = vsel %vm1164, %v1597, %v1766
      %v1768 = vsel %vm1166, %v1604, %v1767
      %v1769 = vsel %vm1168, %v1611, %v1768
      %v1770 = vsel %vm1156, %v1625, %v1618
      %v1771 = vsel %vm1158, %v1632, %v1770
      %v1772 = vsel %vm1160, %v1639, %v1771
      %v1773 = vsel %vm1162, %v1646, %v1772
      %v1774 = vsel %vm1164, %v1653, %v1773
      %v1775 = vsel %vm1166, %v1660, %v1774
      %v1776 = vsel %vm1168, %v1667, %v1775
      %v1777 = vsel %vm1156, %v1681, %v1674
      %v1778 = vsel %vm1158, %v1688, %v1777
      %v1779 = vsel %vm1160, %v1695, %v1778
      %v1780 = vsel %vm1162, %v1702, %v1779
      %v1781 = vsel %vm1164, %v1709, %v1780
      %v1782 = vsel %vm1166, %v1716, %v1781
      %v1783 = vsel %vm1168, %v1723, %v1782
      %1788 = vst.msk [vmem:[%s282] sm:$0xff] %vm403, %v1762
      %1789 = vst.msk [vmem:[%s282 + $0x8] sm:$0xff] %vm403, %v1769
      %1790 = vst.msk [vmem:[%s282 + $0x10] sm:$0xff] %vm403, %v1776
      %1791 = vst.msk [vmem:[%s282 + $0x18] sm:$0xff] %vm403, %v1783
      %s1792 = smul.u32 4, %s27
      %p1793 = scmp.lt.s32.totalorder %s1792, 7
      %s1794 = scalar_select %p1793, %s1792, 7
      %s1795 = smul.addr %s1794, 8
      %s1796 = scalar_lea.vmem %s8, %s1795
      // Predicated region
      $region89: #{tpu_custom_call.1} parent=43 // pred_check
        %p1797 = pneg %p181
      $region90: #{tpu_custom_call.1} parent=43 // pred_check_branch
        %1799 = sbr.rel (%p1797) target = $region92
      $region91: #{tpu_custom_call.1} parent=43 // pred_region
        %s1800 = smul.u32 4, %s27
      $region92: #{tpu_custom_call.1} parent=43 // pred_fallthru
        _
    $region44: #{tpu_custom_call.1} parent=5 // pred_fallthru
      _
    %p1801 = scmp.le.s32.totalorder 2, %s22
    // Predicated region
    $region93: #{tpu_custom_call.1} parent=5 // pred_check
      %p1802 = pneg %p1801
    $region94: #{tpu_custom_call.1} parent=5 // pred_check_branch
      %1804 = sbr.rel (%p1802) target = $region96
    $region95: #{tpu_custom_call.1} parent=5 // pred_region
      %s1805 = ssub.s32 %s22, 2
      // Predicated region
      $region97: #{tpu_custom_call.1} parent=95 // pred_check
        %p1806 = pneg %p187
      $region98: #{tpu_custom_call.1} parent=95 // pred_check_branch
        %1808 = sbr.rel (%p1806) target = $region100
      $region99: #{tpu_custom_call.1} parent=95 // pred_region
        %s1809 = smul.u32 4, %s28
        %p1810 = scmp.lt.s32.totalorder %s1809, 7
        %s1811 = scalar_select %p1810, %s1809, 7
        %s1812 = smul.addr %s1811, 8
        %s1813 = scalar_lea.vmem %s8, %s1812
      $region100: #{tpu_custom_call.1} parent=95 // pred_fallthru
        _
    $region96: #{tpu_custom_call.1} parent=5 // pred_fallthru
      _
  $region6: #{tpu_custom_call.1} parent=0 // loop_footer
    %s26 = sadd.s32 1, %s22
  $region7: #{tpu_custom_call.1} parent=0 // loop_footer_branch
    %21 = sbr.rel target = $region3
  $region8: #{tpu_custom_call.1} parent=0 // loop_exit
    _
  %1814 = vsyncmov [#allocation3]
  %s1815 = vpop.sfrf %1814
  %p1816 = scmp.eq.s32.totalorder %s1815, 0
  %p1817 = pneg %p1816
  %1819 = shalt.err (%p1817)

</llo_original>
